<compile_context>
chip_gen: v5e
topology: v5e:2x2
jax: 0.10.0
libtpu: 0.0.40
codegen_flags: <defaults>
</compile_context>

<pallas_src>
import functools

import jax
import jax.numpy as jnp
from jax.experimental import pallas as pl
from jax.experimental.pallas import tpu as pltpu


_SLOPE = 0.01       # PyTorch LeakyReLU default negative_slope
_BN_EPS = 1e-5      # PyTorch BatchNorm1d default eps


def _leaky(v):
    return jnp.where(v >= 0.0, v, v * _SLOPE)


def _round_up8(n):
    return -(-n // 8) * 8


def _round_up128(n):
    return -(-n // 128) * 128


def _pick_tile(n, tile_n):
    return min(tile_n, max(8, _round_up8(n)))


_PARALLEL = pltpu.CompilerParams(dimension_semantics=("parallel",))


# ----------------------------------------------------------------------------
# Kernel A: fused feature_align (5x Linear+LeakyReLU) + 3 expert heads.
#   des/tweets (and their weights) are bf16; all matmuls accumulate in f32.
# ----------------------------------------------------------------------------
def _align_heads_kernel(des_ref, tw_ref, small_ref,
                        wdes_ref, wtw_ref, wsmall_ref,
                        balign_ref, whall_ref, bheads_ref, out_ref, *, a):
    f32 = jnp.float32
    b = balign_ref[...]
    des_a = _leaky(jnp.dot(des_ref[...], wdes_ref[...],
                           preferred_element_type=f32) + b[:, 0:a])
    tw_a = _leaky(jnp.dot(tw_ref[...], wtw_ref[...],
                          preferred_element_type=f32) + b[:, a:2 * a])
    # (tile,17) @ (17,3a) block-diagonal slab -> [num_a | cat_a | nfh_a]
    small_a = _leaky(jnp.dot(small_ref[...], wsmall_ref[...],
                             preferred_element_type=f32) + b[:, 2 * a:5 * a])
    x5 = jnp.concatenate([des_a, tw_a, small_a], axis=1)               # (tile, 5a)
    heads = jnp.dot(x5, whall_ref[...], preferred_element_type=f32)    # one K=5a matmul
    out_ref[...] = _leaky(heads + bheads_ref[...]).astype(out_ref.dtype)


def fused_align_heads(des_bf, tw_bf, small, w_des_bf, w_tw_bf, w_small,
                      b_align, wh_all, b_heads, *, tile_n=512):
    n = des_bf.shape[0]
    a = w_des_bf.shape[1]
    hd = wh_all.shape[1]
    tile = _pick_tile(n, tile_n)
    grid = (pl.cdiv(n, tile),)

    def row_spec(width):
        return pl.BlockSpec((tile, width), lambda i: (i, 0))

    def full_spec(shape):
        return pl.BlockSpec(shape, lambda i: (0, 0))

    kernel = functools.partial(_align_heads_kernel, a=a)
    return pl.pallas_call(
        kernel,
        out_shape=jax.ShapeDtypeStruct((n, hd), jnp.float32),
        grid=grid,
        in_specs=[
            row_spec(des_bf.shape[1]), row_spec(tw_bf.shape[1]), row_spec(small.shape[1]),
            full_spec(w_des_bf.shape), full_spec(w_tw_bf.shape), full_spec(w_small.shape),
            full_spec(b_align.shape), full_spec(wh_all.shape), full_spec(b_heads.shape),
        ],
        out_specs=pl.BlockSpec((tile, hd), lambda i: (i, 0)),
        compiler_params=_PARALLEL,
    )(des_bf, tw_bf, small, w_des_bf, w_tw_bf, w_small, b_align, wh_all, b_heads)


# ----------------------------------------------------------------------------
# Kernel B: 3-token self-attention (BN1 folded into wqkv/bqkv) + FixedPooling(6)
#           flatten, written as a lane-dense padded slab.
# ----------------------------------------------------------------------------
def _fusion_kernel(x_ref, wqkv_ref, bqkv_ref, out_ref, *, d, pad):
    f32 = jnp.float32
    t = x_ref.shape[0]
    # BN1 is pre-folded into wqkv/bqkv, so x is the raw heads slab.
    qkv = jnp.dot(x_ref[...], wqkv_ref[...],
                  preferred_element_type=f32) + bqkv_ref[...]            # (t, 9d)
    scale = 1.0 / (float(d) ** 0.5)
    q = [qkv[:, d * l:d * (l + 1)] for l in range(3)]
    k = [qkv[:, 3 * d + d * m:3 * d + d * (m + 1)] for m in range(3)]
    v = [qkv[:, 6 * d + d * m:6 * d + d * (m + 1)] for m in range(3)]

    y_parts, att_rows = [], []
    zeros3 = jnp.zeros((t, 3), f32)
    for l in range(3):                    # unrolled VPU softmax, no micro-matmuls
        s = [jnp.sum(q[l] * k[m], axis=1, keepdims=True) * scale for m in range(3)]
        mx = jnp.maximum(jnp.maximum(s[0], s[1]), s[2])
        e = [jnp.exp(si - mx) for si in s]
        inv = 1.0 / (e[0] + e[1] + e[2])
        p = [ei * inv for ei in e]
        y_parts.append(p[0] * v[0] + p[1] * v[1] + p[2] * v[2])          # (t, d)
        # FixedPooling(6) on a softmaxed 3x3 == zero-pad into the top-left of a
        # 6x6 (pool kernel is (1,1)) and flatten; 6x6-row l = [p0 p1 p2 0 0 0].
        att_rows.append(jnp.concatenate([p[0], p[1], p[2], zeros3], axis=1))

    tail = jnp.zeros((t, 18 + pad), f32)  # 6x6 rows 3..5 (all zero) + lane padding
    out = jnp.concatenate(y_parts + att_rows + [tail], axis=1)           # (t, ow_pad)
    out_ref[...] = out.astype(out_ref.dtype)


def fused_fusion(heads, wqkv_fold, bqkv, *, d, ow_pad, tile_n=512):
    n, hd = heads.shape
    tile = _pick_tile(n, tile_n)
    grid = (pl.cdiv(n, tile),)
    kernel = functools.partial(_fusion_kernel, d=d, pad=ow_pad - (3 * d + 36))
    return pl.pallas_call(
        kernel,
        out_shape=jax.ShapeDtypeStruct((n, ow_pad), jnp.float32),
        grid=grid,
        in_specs=[
            pl.BlockSpec((tile, hd), lambda i: (i, 0)),
            pl.BlockSpec((hd, 9 * d), lambda i: (0, 0)),
            pl.BlockSpec((1, 9 * d), lambda i: (0, 0)),
        ],
        out_specs=pl.BlockSpec((tile, ow_pad), lambda i: (i, 0)),
        compiler_params=_PARALLEL,
    )(heads, wqkv_fold, bqkv)


# ----------------------------------------------------------------------------
# Plain-JAX BN batch statistics (training mode, biased variance).
# ----------------------------------------------------------------------------
def _bn1_stats(heads, d, eps=_BN_EPS):
    # heads: (N, 3d) packed [token0 | token1 | token2]; BN1d is over channels d
    # with batch statistics over (N, L=3).
    m = jnp.mean(heads, axis=0)
    m2 = jnp.mean(heads * heads, axis=0)
    mr = m.reshape(3, d).mean(axis=0)
    m2r = m2.reshape(3, d).mean(axis=0)
    var = jnp.maximum(m2r - mr * mr, 0.0)
    inv = jax.lax.rsqrt(var + eps)
    return jnp.tile(mr, 3).reshape(1, 3 * d), jnp.tile(inv, 3).reshape(1, 3 * d)


def _bn2_stats(y, eps=_BN_EPS):
    mean = jnp.mean(y, axis=0, keepdims=True)
    var = jnp.maximum(jnp.mean(y * y, axis=0, keepdims=True) - mean * mean, 0.0)
    return mean, jax.lax.rsqrt(var + eps)


# ----------------------------------------------------------------------------
# Parameters (deterministic synthetic init)
# ----------------------------------------------------------------------------
def init_params(key, output_size, align_size):
    ks = jax.random.split(key, 16)
    s = 0.05

    def lin(k, fan_in, fan_out):
        kw, kb = jax.random.split(k)
        return (jax.random.normal(kw, (fan_in, fan_out), jnp.float32) * s,
                jax.random.normal(kb, (fan_out,), jnp.float32) * s)

    p = {}
    p["w_des"], p["b_des"] = lin(ks[0], 768, align_size)
    p["w_tweet"], p["b_tweet"] = lin(ks[1], 768, align_size)
    p["w_num"], p["b_num"] = lin(ks[2], 5, align_size)
    p["w_cat"], p["b_cat"] = lin(ks[3], 3, align_size)
    p["w_nfh"], p["b_nfh"] = lin(ks[4], 9, align_size)
    p["w_gnn"], p["b_gnn"] = lin(ks[5], align_size * 4, output_size)
    p["w_text"], p["b_text"] = lin(ks[6], align_size * 2, output_size)
    p["w_catmoe"], p["b_catmoe"] = lin(ks[7], align_size * 2, output_size)
    p["wq"] = jax.random.normal(ks[8], (output_size, output_size), jnp.float32) * s
    p["wk"] = jax.random.normal(ks[9], (output_size, output_size), jnp.float32) * s
    p["wv"] = jax.random.normal(ks[10], (output_size, output_size), jnp.float32) * s
    p["w_cls"], p["b_cls"] = lin(ks[11], output_size * 3 + 36, 2)
    return p


# ----------------------------------------------------------------------------
# AllInOne1_bl forward
# ----------------------------------------------------------------------------
def all_in_one_forward(params, des, tweets, num_prop, cat_prop, num_for_h,
                       edge_index, edge_type, *, output_size, align_size):
    # TODO(synk): BotRGCN_fmoe / MoE(MLPclassifier) / DeeProBot_MoE_bl / LModel
    # sources were not provided; each expert head is stood in by a single
    # linear+LeakyReLU on the aligned features (so edge_index/edge_type are
    # unused), the fusion is a single-head self-attention over the 3 tokens,
    # and MoE gating aux losses are returned as 0.
    del edge_index, edge_type
    n = des.shape[0]
    cap = min(11826, n)          # reference keeps only the first 11826 labelled nodes
    d = output_size
    a = align_size
    f32 = jnp.float32
    bf16 = jnp.bfloat16

    # stand-in heads are per-row -> slicing inputs first == slice-after-head.
    des_bf = des[:cap].astype(bf16)
    tw_bf = tweets[:cap].astype(bf16)
    small = jnp.concatenate([num_prop[:cap], cat_prop[:cap], num_for_h[:cap]],
                            axis=1).astype(f32)                          # (cap, 17)

    # ---- tiny host-side weight packing ------------------------------------
    w_des_bf = params["w_des"].astype(bf16)
    w_tw_bf = params["w_tweet"].astype(bf16)
    z = lambda r, c: jnp.zeros((r, c), f32)
    wn, wc_, wf = params["w_num"], params["w_cat"], params["w_nfh"]
    w_small = jnp.concatenate([                                          # (17, 3a)
        jnp.concatenate([wn, z(5, a), z(5, a)], axis=1),
        jnp.concatenate([z(3, a), wc_, z(3, a)], axis=1),
        jnp.concatenate([z(9, a), z(9, a), wf], axis=1),
    ], axis=0)
    b_align = jnp.concatenate([params["b_des"], params["b_tweet"], params["b_num"],
                               params["b_cat"], params["b_nfh"]]).reshape(1, 5 * a)
    zd = z(a, d)
    wg, wt, wcm = params["w_gnn"], params["w_text"], params["w_catmoe"]
    # per-modality (a, 3d) blocks so the 3 head linears become one packed slab
    wh_all = jnp.concatenate([
        jnp.concatenate([wg[0:a], wt[a:2 * a], zd], axis=1),             # des
        jnp.concatenate([wg[a:2 * a], wt[0:a], zd], axis=1),             # tweets
        jnp.concatenate([wg[2 * a:3 * a], zd, zd], axis=1),              # num
        jnp.concatenate([wg[3 * a:4 * a], zd, wcm[a:2 * a]], axis=1),    # cat
        jnp.concatenate([zd, zd, wcm[0:a]], axis=1),                     # num_for_h
    ], axis=0)                                                           # (5a, 3d)
    b_heads = jnp.concatenate([params["b_gnn"], params["b_text"],
                               params["b_catmoe"]]).reshape(1, 3 * d)

    # ---- kernel A: align + heads -> (cap, 3d) ------------------------------
    heads = fused_align_heads(des_bf, tw_bf, small, w_des_bf, w_tw_bf, w_small,
                              b_align, wh_all, b_heads)
    exp_loss = jnp.float32(0.0)

    # nn.Dropout(0.3): its output is immediately overwritten in the reference
    # forward, so it has no effect and is omitted.

    # ---- bn1 stats folded into QKV; kernel B: attention + pooling ----------
    mean1, invstd1 = _bn1_stats(heads, d)
    eye3 = jnp.eye(3, dtype=f32)
    wqkv = jnp.concatenate([jnp.kron(eye3, params["wq"]),
                            jnp.kron(eye3, params["wk"]),
                            jnp.kron(eye3, params["wv"])], axis=1)       # (3d, 9d)
    wqkv_fold = invstd1.reshape(3 * d, 1) * wqkv                         # diag(invstd1)@wqkv
    bqkv = -(mean1 * invstd1) @ wqkv                                     # (1, 9d)

    ow = 3 * d + 36
    ow_pad = _round_up128(ow)                                            # lane-dense out
    ycat = fused_fusion(heads, wqkv_fold, bqkv, d=d, ow_pad=ow_pad)      # (cap, ow_pad)

    # ---- bn2 folded into the classifier (tiny matmul left to XLA) ----------
    mean2, invstd2 = _bn2_stats(ycat[:, :ow])
    w_cls, b_cls = params["w_cls"], params["b_cls"]
    w_fold = jnp.concatenate([invstd2.reshape(ow, 1) * w_cls,
                              z(ow_pad - ow, w_cls.shape[1])], axis=0)   # (ow_pad, 2)
    b_fold = b_cls.reshape(1, -1) - (mean2 * invstd2) @ w_cls            # (1, 2)
    y = ycat @ w_fold + b_fold
    return y, exp_loss


# ----------------------------------------------------------------------------
if __name__ == "__main__":
    N = 8              # small synthetic graph (< 11826, so the slice is a no-op)
    E = 16
    OUTPUT_SIZE = 16
    ALIGN_SIZE = 32

    key = jax.random.PRNGKey(0)
    k = jax.random.split(key, 8)
    des_tensor = jax.random.normal(k[0], (N, 768), jnp.float32)
    tweets_tensor = jax.random.normal(k[1], (N, 768), jnp.float32)
    num_prop = jax.random.normal(k[2], (N, 5), jnp.float32)
    category_prop = jax.random.normal(k[3], (N, 3), jnp.float32)
    num_for_h = jax.random.normal(k[4], (N, 9), jnp.float32)
    edge_index = jax.random.randint(k[5], (2, E), 0, N, jnp.int32)
    edge_type = jax.random.randint(k[6], (E,), 0, 2, jnp.int32)

    params = init_params(jax.random.PRNGKey(42), OUTPUT_SIZE, ALIGN_SIZE)

    fwd = jax.jit(functools.partial(all_in_one_forward,
                                    output_size=OUTPUT_SIZE, align_size=ALIGN_SIZE))
    y, exp_loss = fwd(params, des_tensor, tweets_tensor, num_prop, category_prop,
                      num_for_h, edge_index, edge_type)
    jax.block_until_ready((y, exp_loss))
    assert y.shape == (N, 2)
    print("KERNEL_OK")
</pallas_src>

<mosaic_0001>
module attributes {stable_mosaic.version = 11 : i64} {
  func.func @_align_heads_kernel(%arg0: i32, %arg1: memref<8x768xbf16, #tpu.memory_space<vmem>>, %arg2: memref<8x768xbf16, #tpu.memory_space<vmem>>, %arg3: memref<8x17xf32, #tpu.memory_space<vmem>>, %arg4: memref<768x32xbf16, #tpu.memory_space<vmem>>, %arg5: memref<768x32xbf16, #tpu.memory_space<vmem>>, %arg6: memref<17x96xf32, #tpu.memory_space<vmem>>, %arg7: memref<1x160xf32, #tpu.memory_space<vmem>>, %arg8: memref<160x48xf32, #tpu.memory_space<vmem>>, %arg9: memref<1x48xf32, #tpu.memory_space<vmem>>, %arg10: memref<8x48xf32, #tpu.memory_space<vmem>>) attributes {dimension_semantics = [#tpu.dimension_semantics<parallel>], iteration_bounds = array<i64: 1>, scalar_prefetch = 0 : i64, scratch_operands = 0 : i64, tpu.core_type = #tpu.core_type<tc>, window_params = [{transform_indices = @transform_0, window_bounds = array<i64: 8, 768>}, {transform_indices = @transform_1, window_bounds = array<i64: 8, 768>}, {transform_indices = @transform_2, window_bounds = array<i64: 8, 17>}, {pipeline_mode = #tpu.pipeline_mode<synchronous>, transform_indices = @transform_3, window_bounds = array<i64: 768, 32>}, {pipeline_mode = #tpu.pipeline_mode<synchronous>, transform_indices = @transform_4, window_bounds = array<i64: 768, 32>}, {pipeline_mode = #tpu.pipeline_mode<synchronous>, transform_indices = @transform_5, window_bounds = array<i64: 17, 96>}, {pipeline_mode = #tpu.pipeline_mode<synchronous>, transform_indices = @transform_6, window_bounds = array<i64: 1, 160>}, {pipeline_mode = #tpu.pipeline_mode<synchronous>, transform_indices = @transform_7, window_bounds = array<i64: 160, 48>}, {pipeline_mode = #tpu.pipeline_mode<synchronous>, transform_indices = @transform_8, window_bounds = array<i64: 1, 48>}, {transform_indices = @transform_9, window_bounds = array<i64: 8, 48>}]} {
    %c0 = arith.constant 0 : index
    %c0_0 = arith.constant 0 : index
    %0 = vector.load %arg7[%c0, %c0_0] : memref<1x160xf32, #tpu.memory_space<vmem>>, vector<1x160xf32>
    %c0_1 = arith.constant 0 : index
    %c0_2 = arith.constant 0 : index
    %1 = vector.load %arg1[%c0_1, %c0_2] : memref<8x768xbf16, #tpu.memory_space<vmem>>, vector<8x768xbf16>
    %c0_3 = arith.constant 0 : index
    %c0_4 = arith.constant 0 : index
    %2 = vector.load %arg4[%c0_3, %c0_4] : memref<768x32xbf16, #tpu.memory_space<vmem>>, vector<768x32xbf16>
    %cst = arith.constant dense<0.000000e+00> : vector<8x32xf32>
    %3 = tpu.matmul %1, %2, %cst {dimension_numbers = #tpu.dot_dimension_numbers<[1], [0], [0], [1], [0, 0, 1, 1], [], []>} : vector<8x768xbf16>, vector<768x32xbf16>, vector<8x32xf32> -> vector<8x32xf32>
    %4 = vector.extract_strided_slice %0 {offsets = [0, 0], sizes = [1, 32], strides = [1, 1]} : vector<1x160xf32> to vector<1x32xf32>
    %5 = vector.broadcast %4 : vector<1x32xf32> to vector<8x32xf32>
    %6 = arith.addf %3, %5 : vector<8x32xf32>
    %cst_5 = arith.constant 0.000000e+00 : f32
    %7 = vector.broadcast %cst_5 : f32 to vector<8x32xf32>
    %8 = arith.cmpf oge, %6, %7 : vector<8x32xf32>
    %cst_6 = arith.constant 0.00999999977 : f32
    %9 = vector.broadcast %cst_6 : f32 to vector<8x32xf32>
    %10 = arith.mulf %6, %9 : vector<8x32xf32>
    %11 = arith.select %8, %6, %10 : vector<8x32xi1>, vector<8x32xf32>
    %c0_7 = arith.constant 0 : index
    %c0_8 = arith.constant 0 : index
    %12 = vector.load %arg2[%c0_7, %c0_8] : memref<8x768xbf16, #tpu.memory_space<vmem>>, vector<8x768xbf16>
    %c0_9 = arith.constant 0 : index
    %c0_10 = arith.constant 0 : index
    %13 = vector.load %arg5[%c0_9, %c0_10] : memref<768x32xbf16, #tpu.memory_space<vmem>>, vector<768x32xbf16>
    %cst_11 = arith.constant dense<0.000000e+00> : vector<8x32xf32>
    %14 = tpu.matmul %12, %13, %cst_11 {dimension_numbers = #tpu.dot_dimension_numbers<[1], [0], [0], [1], [0, 0, 1, 1], [], []>} : vector<8x768xbf16>, vector<768x32xbf16>, vector<8x32xf32> -> vector<8x32xf32>
    %15 = vector.extract_strided_slice %0 {offsets = [0, 32], sizes = [1, 32], strides = [1, 1]} : vector<1x160xf32> to vector<1x32xf32>
    %16 = vector.broadcast %15 : vector<1x32xf32> to vector<8x32xf32>
    %17 = arith.addf %14, %16 : vector<8x32xf32>
    %cst_12 = arith.constant 0.000000e+00 : f32
    %18 = vector.broadcast %cst_12 : f32 to vector<8x32xf32>
    %19 = arith.cmpf oge, %17, %18 : vector<8x32xf32>
    %cst_13 = arith.constant 0.00999999977 : f32
    %20 = vector.broadcast %cst_13 : f32 to vector<8x32xf32>
    %21 = arith.mulf %17, %20 : vector<8x32xf32>
    %22 = arith.select %19, %17, %21 : vector<8x32xi1>, vector<8x32xf32>
    %c0_14 = arith.constant 0 : index
    %c0_15 = arith.constant 0 : index
    %23 = vector.load %arg3[%c0_14, %c0_15] : memref<8x17xf32, #tpu.memory_space<vmem>>, vector<8x17xf32>
    %c0_16 = arith.constant 0 : index
    %c0_17 = arith.constant 0 : index
    %24 = vector.load %arg6[%c0_16, %c0_17] : memref<17x96xf32, #tpu.memory_space<vmem>>, vector<17x96xf32>
    %cst_18 = arith.constant dense<0.000000e+00> : vector<8x96xf32>
    %25 = tpu.matmul %23, %24, %cst_18 {dimension_numbers = #tpu.dot_dimension_numbers<[1], [0], [0], [1], [0, 0, 1, 1], [], []>} : vector<8x17xf32>, vector<17x96xf32>, vector<8x96xf32> -> vector<8x96xf32>
    %26 = vector.extract_strided_slice %0 {offsets = [0, 64], sizes = [1, 96], strides = [1, 1]} : vector<1x160xf32> to vector<1x96xf32>
    %27 = vector.broadcast %26 : vector<1x96xf32> to vector<8x96xf32>
    %28 = arith.addf %25, %27 : vector<8x96xf32>
    %cst_19 = arith.constant 0.000000e+00 : f32
    %29 = vector.broadcast %cst_19 : f32 to vector<8x96xf32>
    %30 = arith.cmpf oge, %28, %29 : vector<8x96xf32>
    %cst_20 = arith.constant 0.00999999977 : f32
    %31 = vector.broadcast %cst_20 : f32 to vector<8x96xf32>
    %32 = arith.mulf %28, %31 : vector<8x96xf32>
    %33 = arith.select %30, %28, %32 : vector<8x96xi1>, vector<8x96xf32>
    %34 = tpu.concatenate %11, %22, %33 in 1 : vector<8x32xf32>, vector<8x32xf32>, vector<8x96xf32> -> vector<8x160xf32>
    %c0_21 = arith.constant 0 : index
    %c0_22 = arith.constant 0 : index
    %35 = vector.load %arg8[%c0_21, %c0_22] : memref<160x48xf32, #tpu.memory_space<vmem>>, vector<160x48xf32>
    %cst_23 = arith.constant dense<0.000000e+00> : vector<8x48xf32>
    %36 = tpu.matmul %34, %35, %cst_23 {dimension_numbers = #tpu.dot_dimension_numbers<[1], [0], [0], [1], [0, 0, 1, 1], [], []>} : vector<8x160xf32>, vector<160x48xf32>, vector<8x48xf32> -> vector<8x48xf32>
    %c0_24 = arith.constant 0 : index
    %c0_25 = arith.constant 0 : index
    %37 = vector.load %arg9[%c0_24, %c0_25] : memref<1x48xf32, #tpu.memory_space<vmem>>, vector<1x48xf32>
    %38 = vector.broadcast %37 : vector<1x48xf32> to vector<8x48xf32>
    %39 = arith.addf %36, %38 : vector<8x48xf32>
    %cst_26 = arith.constant 0.000000e+00 : f32
    %40 = vector.broadcast %cst_26 : f32 to vector<8x48xf32>
    %41 = arith.cmpf oge, %39, %40 : vector<8x48xf32>
    %cst_27 = arith.constant 0.00999999977 : f32
    %42 = vector.broadcast %cst_27 : f32 to vector<8x48xf32>
    %43 = arith.mulf %39, %42 : vector<8x48xf32>
    %44 = arith.select %41, %39, %43 : vector<8x48xi1>, vector<8x48xf32>
    %c0_28 = arith.constant 0 : index
    %c0_29 = arith.constant 0 : index
    %45 = vector.load %arg10[%c0_28, %c0_29] : memref<8x48xf32, #tpu.memory_space<vmem>>, vector<8x48xf32>
    tpu.vector_store %arg10[%c0_28, %c0_29], %44 {strides = array<i32>} : memref<8x48xf32, #tpu.memory_space<vmem>>, vector<8x48xf32>,
    return
  }
  func.func @transform_0(%arg0: i32) -> (i32, i32) {
    %c0_i32 = arith.constant 0 : i32
    %c0_i32_0 = arith.constant 0 : i32
    return %arg0, %c0_i32 : i32, i32
  }
  func.func @transform_1(%arg0: i32) -> (i32, i32) {
    %c0_i32 = arith.constant 0 : i32
    %c0_i32_0 = arith.constant 0 : i32
    return %arg0, %c0_i32 : i32, i32
  }
  func.func @transform_2(%arg0: i32) -> (i32, i32) {
    %c0_i32 = arith.constant 0 : i32
    %c0_i32_0 = arith.constant 0 : i32
    return %arg0, %c0_i32 : i32, i32
  }
  func.func @transform_3(%arg0: i32) -> (i32, i32) {
    %c0_i32 = arith.constant 0 : i32
    %c0_i32_0 = arith.constant 0 : i32
    %c0_i32_1 = arith.constant 0 : i32
    return %c0_i32, %c0_i32_0 : i32, i32
  }
  func.func @transform_4(%arg0: i32) -> (i32, i32) {
    %c0_i32 = arith.constant 0 : i32
    %c0_i32_0 = arith.constant 0 : i32
    %c0_i32_1 = arith.constant 0 : i32
    return %c0_i32, %c0_i32_0 : i32, i32
  }
  func.func @transform_5(%arg0: i32) -> (i32, i32) {
    %c0_i32 = arith.constant 0 : i32
    %c0_i32_0 = arith.constant 0 : i32
    %c0_i32_1 = arith.constant 0 : i32
    return %c0_i32, %c0_i32_0 : i32, i32
  }
  func.func @transform_6(%arg0: i32) -> (i32, i32) {
    %c0_i32 = arith.constant 0 : i32
    %c0_i32_0 = arith.constant 0 : i32
    %c0_i32_1 = arith.constant 0 : i32
    return %c0_i32, %c0_i32_0 : i32, i32
  }
  func.func @transform_7(%arg0: i32) -> (i32, i32) {
    %c0_i32 = arith.constant 0 : i32
    %c0_i32_0 = arith.constant 0 : i32
    %c0_i32_1 = arith.constant 0 : i32
    return %c0_i32, %c0_i32_0 : i32, i32
  }
  func.func @transform_8(%arg0: i32) -> (i32, i32) {
    %c0_i32 = arith.constant 0 : i32
    %c0_i32_0 = arith.constant 0 : i32
    %c0_i32_1 = arith.constant 0 : i32
    return %c0_i32, %c0_i32_0 : i32, i32
  }
  func.func @transform_9(%arg0: i32) -> (i32, i32) {
    %c0_i32 = arith.constant 0 : i32
    %c0_i32_0 = arith.constant 0 : i32
    return %arg0, %c0_i32 : i32, i32
  }
}

module attributes {stable_mosaic.version = 11 : i64} {
  func.func @_fusion_kernel(%arg0: i32, %arg1: memref<8x48xf32, #tpu.memory_space<vmem>>, %arg2: memref<48x144xf32, #tpu.memory_space<vmem>>, %arg3: memref<1x144xf32, #tpu.memory_space<vmem>>, %arg4: memref<8x128xf32, #tpu.memory_space<vmem>>) attributes {dimension_semantics = [#tpu.dimension_semantics<parallel>], iteration_bounds = array<i64: 1>, scalar_prefetch = 0 : i64, scratch_operands = 0 : i64, tpu.core_type = #tpu.core_type<tc>, window_params = [{transform_indices = @transform_0, window_bounds = array<i64: 8, 48>}, {pipeline_mode = #tpu.pipeline_mode<synchronous>, transform_indices = @transform_1, window_bounds = array<i64: 48, 144>}, {pipeline_mode = #tpu.pipeline_mode<synchronous>, transform_indices = @transform_2, window_bounds = array<i64: 1, 144>}, {transform_indices = @transform_3, window_bounds = array<i64: 8, 128>}]} {
    %c0 = arith.constant 0 : index
    %c0_0 = arith.constant 0 : index
    %0 = vector.load %arg1[%c0, %c0_0] : memref<8x48xf32, #tpu.memory_space<vmem>>, vector<8x48xf32>
    %c0_1 = arith.constant 0 : index
    %c0_2 = arith.constant 0 : index
    %1 = vector.load %arg2[%c0_1, %c0_2] : memref<48x144xf32, #tpu.memory_space<vmem>>, vector<48x144xf32>
    %cst = arith.constant dense<0.000000e+00> : vector<8x144xf32>
    %2 = tpu.matmul %0, %1, %cst {dimension_numbers = #tpu.dot_dimension_numbers<[1], [0], [0], [1], [0, 0, 1, 1], [], []>} : vector<8x48xf32>, vector<48x144xf32>, vector<8x144xf32> -> vector<8x144xf32>
    %c0_3 = arith.constant 0 : index
    %c0_4 = arith.constant 0 : index
    %3 = vector.load %arg3[%c0_3, %c0_4] : memref<1x144xf32, #tpu.memory_space<vmem>>, vector<1x144xf32>
    %4 = vector.broadcast %3 : vector<1x144xf32> to vector<8x144xf32>
    %5 = arith.addf %2, %4 : vector<8x144xf32>
    %6 = vector.extract_strided_slice %5 {offsets = [0, 0], sizes = [8, 16], strides = [1, 1]} : vector<8x144xf32> to vector<8x16xf32>
    %7 = vector.extract_strided_slice %5 {offsets = [0, 16], sizes = [8, 16], strides = [1, 1]} : vector<8x144xf32> to vector<8x16xf32>
    %8 = vector.extract_strided_slice %5 {offsets = [0, 32], sizes = [8, 16], strides = [1, 1]} : vector<8x144xf32> to vector<8x16xf32>
    %9 = vector.extract_strided_slice %5 {offsets = [0, 48], sizes = [8, 16], strides = [1, 1]} : vector<8x144xf32> to vector<8x16xf32>
    %10 = vector.extract_strided_slice %5 {offsets = [0, 64], sizes = [8, 16], strides = [1, 1]} : vector<8x144xf32> to vector<8x16xf32>
    %11 = vector.extract_strided_slice %5 {offsets = [0, 80], sizes = [8, 16], strides = [1, 1]} : vector<8x144xf32> to vector<8x16xf32>
    %12 = vector.extract_strided_slice %5 {offsets = [0, 96], sizes = [8, 16], strides = [1, 1]} : vector<8x144xf32> to vector<8x16xf32>
    %13 = vector.extract_strided_slice %5 {offsets = [0, 112], sizes = [8, 16], strides = [1, 1]} : vector<8x144xf32> to vector<8x16xf32>
    %14 = vector.extract_strided_slice %5 {offsets = [0, 128], sizes = [8, 16], strides = [1, 1]} : vector<8x144xf32> to vector<8x16xf32>
    %cst_5 = arith.constant 0.000000e+00 : f32
    %15 = vector.broadcast %cst_5 : f32 to vector<8x3xf32>
    %16 = arith.mulf %6, %9 : vector<8x16xf32>
    %cst_6 = arith.constant dense<0.000000e+00> : vector<8xf32>
    %17 = vector.multi_reduction <add>, %16, %cst_6 [1] : vector<8x16xf32> to vector<8xf32>
    %18 = vector.shape_cast %17 : vector<8xf32> to vector<8x1xf32>
    %cst_7 = arith.constant 2.500000e-01 : f32
    %19 = vector.broadcast %cst_7 : f32 to vector<8x1xf32>
    %20 = arith.mulf %18, %19 : vector<8x1xf32>
    %21 = arith.mulf %6, %10 : vector<8x16xf32>
    %cst_8 = arith.constant dense<0.000000e+00> : vector<8xf32>
    %22 = vector.multi_reduction <add>, %21, %cst_8 [1] : vector<8x16xf32> to vector<8xf32>
    %23 = vector.shape_cast %22 : vector<8xf32> to vector<8x1xf32>
    %cst_9 = arith.constant 2.500000e-01 : f32
    %24 = vector.broadcast %cst_9 : f32 to vector<8x1xf32>
    %25 = arith.mulf %23, %24 : vector<8x1xf32>
    %26 = arith.mulf %6, %11 : vector<8x16xf32>
    %cst_10 = arith.constant dense<0.000000e+00> : vector<8xf32>
    %27 = vector.multi_reduction <add>, %26, %cst_10 [1] : vector<8x16xf32> to vector<8xf32>
    %28 = vector.shape_cast %27 : vector<8xf32> to vector<8x1xf32>
    %cst_11 = arith.constant 2.500000e-01 : f32
    %29 = vector.broadcast %cst_11 : f32 to vector<8x1xf32>
    %30 = arith.mulf %28, %29 : vector<8x1xf32>
    %31 = arith.maximumf %20, %25 : vector<8x1xf32>
    %32 = arith.maximumf %31, %30 : vector<8x1xf32>
    %33 = arith.subf %20, %32 : vector<8x1xf32>
    %34 = math.exp %33 : vector<8x1xf32>
    %35 = arith.subf %25, %32 : vector<8x1xf32>
    %36 = math.exp %35 : vector<8x1xf32>
    %37 = arith.subf %30, %32 : vector<8x1xf32>
    %38 = math.exp %37 : vector<8x1xf32>
    %39 = arith.addf %34, %36 : vector<8x1xf32>
    %40 = arith.addf %39, %38 : vector<8x1xf32>
    %cst_12 = arith.constant 1.000000e+00 : f32
    %41 = vector.broadcast %cst_12 : f32 to vector<8x1xf32>
    %42 = arith.divf %41, %40 : vector<8x1xf32>
    %43 = arith.mulf %34, %42 : vector<8x1xf32>
    %44 = arith.mulf %36, %42 : vector<8x1xf32>
    %45 = arith.mulf %38, %42 : vector<8x1xf32>
    %46 = vector.broadcast %43 : vector<8x1xf32> to vector<8x16xf32>
    %47 = arith.mulf %46, %12 : vector<8x16xf32>
    %48 = vector.broadcast %44 : vector<8x1xf32> to vector<8x16xf32>
    %49 = arith.mulf %48, %13 : vector<8x16xf32>
    %50 = arith.addf %47, %49 : vector<8x16xf32>
    %51 = vector.broadcast %45 : vector<8x1xf32> to vector<8x16xf32>
    %52 = arith.mulf %51, %14 : vector<8x16xf32>
    %53 = arith.addf %50, %52 : vector<8x16xf32>
    %54 = tpu.concatenate %43, %44, %45, %15 in 1 : vector<8x1xf32>, vector<8x1xf32>, vector<8x1xf32>, vector<8x3xf32> -> vector<8x6xf32>
    %55 = arith.mulf %7, %9 : vector<8x16xf32>
    %cst_13 = arith.constant dense<0.000000e+00> : vector<8xf32>
    %56 = vector.multi_reduction <add>, %55, %cst_13 [1] : vector<8x16xf32> to vector<8xf32>
    %57 = vector.shape_cast %56 : vector<8xf32> to vector<8x1xf32>
    %cst_14 = arith.constant 2.500000e-01 : f32
    %58 = vector.broadcast %cst_14 : f32 to vector<8x1xf32>
    %59 = arith.mulf %57, %58 : vector<8x1xf32>
    %60 = arith.mulf %7, %10 : vector<8x16xf32>
    %cst_15 = arith.constant dense<0.000000e+00> : vector<8xf32>
    %61 = vector.multi_reduction <add>, %60, %cst_15 [1] : vector<8x16xf32> to vector<8xf32>
    %62 = vector.shape_cast %61 : vector<8xf32> to vector<8x1xf32>
    %cst_16 = arith.constant 2.500000e-01 : f32
    %63 = vector.broadcast %cst_16 : f32 to vector<8x1xf32>
    %64 = arith.mulf %62, %63 : vector<8x1xf32>
    %65 = arith.mulf %7, %11 : vector<8x16xf32>
    %cst_17 = arith.constant dense<0.000000e+00> : vector<8xf32>
    %66 = vector.multi_reduction <add>, %65, %cst_17 [1] : vector<8x16xf32> to vector<8xf32>
    %67 = vector.shape_cast %66 : vector<8xf32> to vector<8x1xf32>
    %cst_18 = arith.constant 2.500000e-01 : f32
    %68 = vector.broadcast %cst_18 : f32 to vector<8x1xf32>
    %69 = arith.mulf %67, %68 : vector<8x1xf32>
    %70 = arith.maximumf %59, %64 : vector<8x1xf32>
    %71 = arith.maximumf %70, %69 : vector<8x1xf32>
    %72 = arith.subf %59, %71 : vector<8x1xf32>
    %73 = math.exp %72 : vector<8x1xf32>
    %74 = arith.subf %64, %71 : vector<8x1xf32>
    %75 = math.exp %74 : vector<8x1xf32>
    %76 = arith.subf %69, %71 : vector<8x1xf32>
    %77 = math.exp %76 : vector<8x1xf32>
    %78 = arith.addf %73, %75 : vector<8x1xf32>
    %79 = arith.addf %78, %77 : vector<8x1xf32>
    %cst_19 = arith.constant 1.000000e+00 : f32
    %80 = vector.broadcast %cst_19 : f32 to vector<8x1xf32>
    %81 = arith.divf %80, %79 : vector<8x1xf32>
    %82 = arith.mulf %73, %81 : vector<8x1xf32>
    %83 = arith.mulf %75, %81 : vector<8x1xf32>
    %84 = arith.mulf %77, %81 : vector<8x1xf32>
    %85 = vector.broadcast %82 : vector<8x1xf32> to vector<8x16xf32>
    %86 = arith.mulf %85, %12 : vector<8x16xf32>
    %87 = vector.broadcast %83 : vector<8x1xf32> to vector<8x16xf32>
    %88 = arith.mulf %87, %13 : vector<8x16xf32>
    %89 = arith.addf %86, %88 : vector<8x16xf32>
    %90 = vector.broadcast %84 : vector<8x1xf32> to vector<8x16xf32>
    %91 = arith.mulf %90, %14 : vector<8x16xf32>
    %92 = arith.addf %89, %91 : vector<8x16xf32>
    %93 = tpu.concatenate %82, %83, %84, %15 in 1 : vector<8x1xf32>, vector<8x1xf32>, vector<8x1xf32>, vector<8x3xf32> -> vector<8x6xf32>
    %94 = arith.mulf %8, %9 : vector<8x16xf32>
    %cst_20 = arith.constant dense<0.000000e+00> : vector<8xf32>
    %95 = vector.multi_reduction <add>, %94, %cst_20 [1] : vector<8x16xf32> to vector<8xf32>
    %96 = vector.shape_cast %95 : vector<8xf32> to vector<8x1xf32>
    %cst_21 = arith.constant 2.500000e-01 : f32
    %97 = vector.broadcast %cst_21 : f32 to vector<8x1xf32>
    %98 = arith.mulf %96, %97 : vector<8x1xf32>
    %99 = arith.mulf %8, %10 : vector<8x16xf32>
    %cst_22 = arith.constant dense<0.000000e+00> : vector<8xf32>
    %100 = vector.multi_reduction <add>, %99, %cst_22 [1] : vector<8x16xf32> to vector<8xf32>
    %101 = vector.shape_cast %100 : vector<8xf32> to vector<8x1xf32>
    %cst_23 = arith.constant 2.500000e-01 : f32
    %102 = vector.broadcast %cst_23 : f32 to vector<8x1xf32>
    %103 = arith.mulf %101, %102 : vector<8x1xf32>
    %104 = arith.mulf %8, %11 : vector<8x16xf32>
    %cst_24 = arith.constant dense<0.000000e+00> : vector<8xf32>
    %105 = vector.multi_reduction <add>, %104, %cst_24 [1] : vector<8x16xf32> to vector<8xf32>
    %106 = vector.shape_cast %105 : vector<8xf32> to vector<8x1xf32>
    %cst_25 = arith.constant 2.500000e-01 : f32
    %107 = vector.broadcast %cst_25 : f32 to vector<8x1xf32>
    %108 = arith.mulf %106, %107 : vector<8x1xf32>
    %109 = arith.maximumf %98, %103 : vector<8x1xf32>
    %110 = arith.maximumf %109, %108 : vector<8x1xf32>
    %111 = arith.subf %98, %110 : vector<8x1xf32>
    %112 = math.exp %111 : vector<8x1xf32>
    %113 = arith.subf %103, %110 : vector<8x1xf32>
    %114 = math.exp %113 : vector<8x1xf32>
    %115 = arith.subf %108, %110 : vector<8x1xf32>
    %116 = math.exp %115 : vector<8x1xf32>
    %117 = arith.addf %112, %114 : vector<8x1xf32>
    %118 = arith.addf %117, %116 : vector<8x1xf32>
    %cst_26 = arith.constant 1.000000e+00 : f32
    %119 = vector.broadcast %cst_26 : f32 to vector<8x1xf32>
    %120 = arith.divf %119, %118 : vector<8x1xf32>
    %121 = arith.mulf %112, %120 : vector<8x1xf32>
    %122 = arith.mulf %114, %120 : vector<8x1xf32>
    %123 = arith.mulf %116, %120 : vector<8x1xf32>
    %124 = vector.broadcast %121 : vector<8x1xf32> to vector<8x16xf32>
    %125 = arith.mulf %124, %12 : vector<8x16xf32>
    %126 = vector.broadcast %122 : vector<8x1xf32> to vector<8x16xf32>
    %127 = arith.mulf %126, %13 : vector<8x16xf32>
    %128 = arith.addf %125, %127 : vector<8x16xf32>
    %129 = vector.broadcast %123 : vector<8x1xf32> to vector<8x16xf32>
    %130 = arith.mulf %129, %14 : vector<8x16xf32>
    %131 = arith.addf %128, %130 : vector<8x16xf32>
    %132 = tpu.concatenate %121, %122, %123, %15 in 1 : vector<8x1xf32>, vector<8x1xf32>, vector<8x1xf32>, vector<8x3xf32> -> vector<8x6xf32>
    %cst_27 = arith.constant 0.000000e+00 : f32
    %133 = vector.broadcast %cst_27 : f32 to vector<8x62xf32>
    %134 = tpu.concatenate %53, %92, %131, %54, %93, %132, %133 in 1 : vector<8x16xf32>, vector<8x16xf32>, vector<8x16xf32>, vector<8x6xf32>, vector<8x6xf32>, vector<8x6xf32>, vector<8x62xf32> -> vector<8x128xf32>
    %c0_28 = arith.constant 0 : index
    %c0_29 = arith.constant 0 : index
    %135 = vector.load %arg4[%c0_28, %c0_29] : memref<8x128xf32, #tpu.memory_space<vmem>>, vector<8x128xf32>
    tpu.vector_store %arg4[%c0_28, %c0_29], %134 {strides = array<i32>} : memref<8x128xf32, #tpu.memory_space<vmem>>, vector<8x128xf32>,
    return
  }
  func.func @transform_0(%arg0: i32) -> (i32, i32) {
    %c0_i32 = arith.constant 0 : i32
    %c0_i32_0 = arith.constant 0 : i32
    return %arg0, %c0_i32 : i32, i32
  }
  func.func @transform_1(%arg0: i32) -> (i32, i32) {
    %c0_i32 = arith.constant 0 : i32
    %c0_i32_0 = arith.constant 0 : i32
    %c0_i32_1 = arith.constant 0 : i32
    return %c0_i32, %c0_i32_0 : i32, i32
  }
  func.func @transform_2(%arg0: i32) -> (i32, i32) {
    %c0_i32 = arith.constant 0 : i32
    %c0_i32_0 = arith.constant 0 : i32
    %c0_i32_1 = arith.constant 0 : i32
    return %c0_i32, %c0_i32_0 : i32, i32
  }
  func.func @transform_3(%arg0: i32) -> (i32, i32) {
    %c0_i32 = arith.constant 0 : i32
    %c0_i32_0 = arith.constant 0 : i32
    return %arg0, %c0_i32 : i32, i32
  }
}

</mosaic_0001>

<llo_original>
// kernel: tile.19
$region0: #{tile.19}
  #allocation0 [shape = 's32[1]{0}', space=sflag, size = 0x4, scoped, tag = 'scoped memory for tile.19']
  %s0 = inlined_call_operand.vmem [shape: f32[16], index: 0, kind: input, shape index: {}]
  %s1 = inlined_call_operand.vmem [shape: f32[3,16], index: 1, kind: output, shape index: {}]
  // Predicated region
  $region2: #{tile.19} parent=0 // pred_check
    _
  $region3: #{tile.19} parent=0 // pred_check_branch
    %3 = sbr.rel (0) target = $region5
  $region4: #{tile.19} parent=0 // pred_region
    _
  $region5: #{tile.19} parent=0 // pred_fallthru
    _
  %v4 = vld [vmem:[%s0] ss:$0 sm:$0xff]
  %5 = vst [vmem:[%s1] sm:$0xf] %v4

// kernel: mul.31
$region0: #{mul.31}
  %s0 = inlined_call_operand.vmem [shape: f32[3,16], index: 0, kind: input, shape index: {}]
  %s1 = inlined_call_operand.vmem [shape: f32[48], index: 1, kind: output, shape index: {}]
  $region1: #{mul.31} parent=0
    #allocation0 [shape = 'u8[4096]{0}', space=vmem, size = 0x1000, scoped, tag = 'scoped mem for output reshape']
    #allocation1 [shape = 'u8[4096]{0}', space=vmem, size = 0x1000, scoped, tag = 'scoped mem for input reshape']
    %s3 = ssub.s32 16, 1
    %v4 = vld [vmem:[%s0] sm:%s3]
    %5 = vst [vmem:[#allocation1] sm:%s3] %v4
    %v6 = vld [vmem:[#allocation1] sm:$0x1]
    %vm7 = vcmask 130048
    %8 = vst.msk [vmem:[#allocation0] sm:$0x1] %vm7, %v6
    %s9 = scalar_lea.vmem [#allocation1], 2
    %v10 = vld [vmem:[%s9] sm:$0x1]
    %11 = vrot.lane.b32.xlu0 %v10, 32
    %v12 = vpop.permute.xlu0 %11
    %vm13 = vcmask 392448
    %14 = vst.msk [vmem:[#allocation0] sm:$0x1] %vm13, %v12
    %s15 = scalar_lea.vmem [#allocation1], 1
    %v16 = vld [vmem:[%s15] sm:$0x1]
    %17 = vrot.lane.b32.xlu0 %v16, 16
    %v18 = vpop.permute.xlu0 %17
    %vm19 = vcmask 261248
    %20 = vst.msk [vmem:[#allocation0] sm:$0x1] %vm19, %v18
    %s22 = ssub.s32 2, 1
    %v23 = vld [vmem:[#allocation0] sm:%s22]
    %s25 = ssub.s32 2, 1
    %26 = vst [vmem:[%s1] sm:%s25] %v23

// kernel: sub.8
$region0: #{sub.8}
  #allocation0 [shape = 's32[1]{0}', space=sflag, size = 0x4, scoped, tag = 'scoped memory for sub.8']
  %s0 = inlined_call_operand.vmem [shape: f32[2], index: 0, kind: input, shape index: {}]
  %s1 = inlined_call_operand.vmem [shape: f32[2], index: 1, kind: input, shape index: {}]
  %s2 = inlined_call_operand.vmem [shape: f32[2], index: 2, kind: output, shape index: {}]
  %v3 = vld [vmem:[%s0] sm:$0x1]
  %v4 = vld [vmem:[%s1] sm:$0x1]
  %5 = xla_tuple %v3, %v4
  %6 = xla_tuple %5
  %v7 = vsub.f32 %v3, %v4
  %8 = xla_tuple %v7
  %9 = vst [vmem:[%s2] sm:$0x1] %v7

// kernel: all_in_one_forward.3
$region0: #{all_in_one_forward.3}
  #allocation0 [shape = 'u32[]', space=smem, size = 0x4, offset = 0x4, fixed_abs, tag = 'smem constant byte address 0x4 - core index']
  #allocation1 [shape = 'u32[72,128]{1,0:T(1,128)}', space=vmem, size = 0x9000, scoped, tag = 'internal scratch']
  %s0 = inlined_call_operand.vmem [shape: f32[8,48], index: 0, kind: input, shape index: {}]
  %s1 = inlined_call_operand.vmem [shape: f32[48,144], index: 1, kind: input, shape index: {}]
  %s2 = inlined_call_operand.vmem [shape: f32[1,144], index: 2, kind: input, shape index: {}]
  %s3 = inlined_call_operand.vmem [shape: f32[8,128], index: 3, kind: output, shape index: {}]
  %s4 = sld [smem:[#allocation0]]
  $region22: #{all_in_one_forward.3} parent=0
    _
  %s6 = ssub.s32 1, %s4
  %s7 = scalar_select 0, %s6, %s4
  // Predicated region
  $region2: #{all_in_one_forward.3} parent=0 // pred_check
    _
  $region3: #{all_in_one_forward.3} parent=0 // pred_check_branch
    %9 = sbr.rel (0) target = $region5
  $region4: #{all_in_one_forward.3} parent=0 // pred_region
    _
  $region5: #{all_in_one_forward.3} parent=0 // pred_fallthru
    _
  // Predicated region
  $region6: #{all_in_one_forward.3} parent=0 // pred_check
    _
  $region7: #{all_in_one_forward.3} parent=0 // pred_check_branch
    %11 = sbr.rel (0) target = $region9
  $region8: #{all_in_one_forward.3} parent=0 // pred_region
    _
  $region9: #{all_in_one_forward.3} parent=0 // pred_fallthru
    _
  // Predicated region
  $region10: #{all_in_one_forward.3} parent=0 // pred_check
    _
  $region11: #{all_in_one_forward.3} parent=0 // pred_check_branch
    %13 = sbr.rel (0) target = $region13
  $region12: #{all_in_one_forward.3} parent=0 // pred_region
    _
  $region13: #{all_in_one_forward.3} parent=0 // pred_fallthru
    _
  %v14 = vld [vmem:[%s0] sm:$0xff]
  %v15 = vld [vmem:[%s1] sm:$0xff]
  %v16 = vld [vmem:[%s1 + $0x8] sm:$0xff]
  %v17 = vld [vmem:[%s1 + $0x10] sm:$0xff]
  %v18 = vld [vmem:[%s1 + $0x18] sm:$0xff]
  %v19 = vld [vmem:[%s1 + $0x20] sm:$0xff]
  %v20 = vld [vmem:[%s1 + $0x28] sm:$0xff]
  %v21 = vld [vmem:[%s1 + $0x30] sm:$0xff]
  %v22 = vld [vmem:[%s1 + $0x38] sm:$0xff]
  %v23 = vld [vmem:[%s1 + $0x40] sm:$0xff]
  %v24 = vld [vmem:[%s1 + $0x48] sm:$0xff]
  %v25 = vld [vmem:[%s1 + $0x50] sm:$0xff]
  %v26 = vld [vmem:[%s1 + $0x58] sm:$0xff]
  %v27 = vld [vmem:[%s2] sm:$0x3]
  %v29 = vperm.slane %v27, 0
  %v30 = vperm.slane %v27, 1
  %vm33 = vcmask 392192
  %v35 = vsel %vm33, %v14, 0
  %37 = vmatpush.msra.mxu0 0.0
  %38 = vmatpush.msra.mxu0 0.0
  %39 = vmatpush.msra.mxu0 0.0
  %40 = vmatpush.msra.mxu0 0.0
  %41 = vmatpush.msra.mxu0 0.0
  %42 = vmatpush.msra.mxu0 0.0
  %43 = vmatpush.msra.mxu0 0.0
  %44 = vmatpush.msra.mxu0 0.0
  %45 = vmatpush.msra.mxu0 0.0
  %46 = vmatpush.msra.mxu0 0.0
  %47 = vmatpush.msra.mxu0 %v25
  %48 = vmatpush.msra.mxu0 %v23
  %49 = vmatpush.msra.mxu0 %v21
  %50 = vmatpush.msra.mxu0 %v19
  %51 = vmatpush.msra.mxu0 %v17
  %52 = vmatpush.msra.mxu0 %v15
  %53 = vmatmul.f32.gmra.mxu0 %v35
  %v54 = vpop.f32.mrf.mxu0
  %v55 = vadd.f32 %v29, %v54
  %56 = vdwg.mxu0
  %57 = vmatpush.msra.mxu0 0.0
  %58 = vmatpush.msra.mxu0 0.0
  %59 = vmatpush.msra.mxu0 0.0
  %60 = vmatpush.msra.mxu0 0.0
  %61 = vmatpush.msra.mxu0 0.0
  %62 = vmatpush.msra.mxu0 0.0
  %63 = vmatpush.msra.mxu0 0.0
  %64 = vmatpush.msra.mxu0 0.0
  %65 = vmatpush.msra.mxu0 0.0
  %66 = vmatpush.msra.mxu0 0.0
  %67 = vmatpush.msra.mxu0 %v26
  %68 = vmatpush.msra.mxu0 %v24
  %69 = vmatpush.msra.mxu0 %v22
  %70 = vmatpush.msra.mxu0 %v20
  %71 = vmatpush.msra.mxu0 %v18
  %72 = vmatpush.msra.mxu0 %v16
  %73 = vmatmul.f32.gmra.mxu0 %v35
  %v74 = vpop.f32.mrf.mxu0
  %v75 = vadd.f32 %v30, %v74
  %76 = vdwg.mxu0
  %78 = vrot.lane.b32.xlu0 %v55, 80
  %v79 = vpop.permute.xlu0 %78
  %v81 = vmul.f32 %v55, %v79
  %vm82 = vcmask 130048
  %v83 = vsel %vm82, %v81, 0.0
  %84 = vadd.xlane.f32.xlu0 %v83
  %v85 = vpop.xlane.xlu0 %84
  %v86 = vmul.f32 %v85, 0.25
  %87 = vrot.lane.b32.xlu0 %v55, 64
  %v88 = vpop.permute.xlu0 %87
  %v90 = vmul.f32 %v55, %v88
  %v91 = vsel %vm82, %v90, 0.0
  %92 = vadd.xlane.f32.xlu0 %v91
  %v93 = vpop.xlane.xlu0 %92
  %v94 = vmul.f32 %v93, 0.25
  %95 = vrot.lane.b32.xlu0 %v55, 48
  %v96 = vpop.permute.xlu0 %95
  %v98 = vmul.f32 %v55, %v96
  %v99 = vsel %vm82, %v98, 0.0
  %100 = vadd.xlane.f32.xlu0 %v99
  %v101 = vpop.xlane.xlu0 %100
  %v102 = vmul.f32 %v101, 0.25
  %v103 = vmax.f32 %v86, %v94
  %v104 = vmax.f32 %v103, %v102
  %v105 = vsub.f32 %v86, %v104
  %v106 = vmul.f32 %v105, 1.442695
  %v107 = vpow.pop %v106
  %v108 = vsub.f32 %v94, %v104
  %v109 = vmul.f32 %v108, 1.442695
  %v110 = vpow.pop %v109
  %v111 = vsub.f32 %v102, %v104
  %v112 = vmul.f32 %v111, 1.442695
  %v113 = vpow.pop %v112
  %v114 = vadd.f32 %v107, %v110
  %v115 = vadd.f32 %v114, %v113
  %v116 = vrcp.pop %v115
  %v117 = vmul.f32 %v115, %v116
  %v118 = vsub.f32 1.0, %v117
  %v119 = vmul.f32 %v116, %v118
  %v120 = vadd.f32 %v116, %v119
  %vm121 = vweird.f32 %v115
  %vm122 = vweird.f32 %v116
  %vm123 = vmor %vm121, %vm122
  %v124 = vsel %vm123, %v116, %v120
  %v125 = vand.u32 2147483647, %v115
  %vm126 = vcmp.eq.f32.partialorder %v125, 8.507059e+37
  %v127 = vand.u32 %v115, 2147483648
  %v128 = vor.u32 1.1754944e-38, %v127
  %v129 = vsel %vm126, %v128, %v124
  %v130 = vmul.f32 1.0, %v129
  %v131 = vmul.f32 %v107, %v130
  %v132 = vmul.f32 %v110, %v130
  %v133 = vmul.f32 %v113, %v130
  %v134 = vmul.f32 %v131, %v55
  %v135 = vmul.f32 %v132, %v55
  %137 = vrot.lane.b32.xlu0 %v135, 112
  %v138 = vpop.permute.xlu0 %137
  %v140 = vadd.f32 %v134, %v138
  %v141 = vmul.f32 %v133, %v75
  %143 = vrot.lane.b32.xlu0 %v141, 96
  %v144 = vpop.permute.xlu0 %143
  %v146 = vadd.f32 %v140, %v144
  %vm147 = vcmask 7168
  %v148 = vsel %vm147, %v131, %v132
  %vm149 = vcmask 15360
  %v150 = vsel %vm149, %v148, %v133
  %vm151 = vcmask 23552
  %v152 = vsel %vm151, %v150, 0.0
  %153 = vrot.lane.b32.xlu0 %v55, 96
  %v154 = vpop.permute.xlu0 %153
  %v156 = vmul.f32 %v55, %v154
  %158 = vrot.lane.b32.xlu0 %v156, 112
  %v159 = vpop.permute.xlu0 %158
  %v161 = vsel %vm82, %v159, 0.0
  %162 = vadd.xlane.f32.xlu0 %v161
  %v163 = vpop.xlane.xlu0 %162
  %v164 = vmul.f32 %v163, 0.25
  %166 = vrot.lane.b32.xlu0 %v81, 112
  %v167 = vpop.permute.xlu0 %166
  %v169 = vsel %vm82, %v167, 0.0
  %170 = vadd.xlane.f32.xlu0 %v169
  %v171 = vpop.xlane.xlu0 %170
  %v172 = vmul.f32 %v171, 0.25
  %174 = vrot.lane.b32.xlu0 %v90, 112
  %v175 = vpop.permute.xlu0 %174
  %v177 = vsel %vm82, %v175, 0.0
  %178 = vadd.xlane.f32.xlu0 %v177
  %v179 = vpop.xlane.xlu0 %178
  %v180 = vmul.f32 %v179, 0.25
  %v181 = vmax.f32 %v164, %v172
  %v182 = vmax.f32 %v181, %v180
  %v183 = vsub.f32 %v164, %v182
  %v184 = vmul.f32 %v183, 1.442695
  %v185 = vpow.pop %v184
  %v186 = vsub.f32 %v172, %v182
  %v187 = vmul.f32 %v186, 1.442695
  %v188 = vpow.pop %v187
  %v189 = vsub.f32 %v180, %v182
  %v190 = vmul.f32 %v189, 1.442695
  %v191 = vpow.pop %v190
  %v192 = vadd.f32 %v185, %v188
  %v193 = vadd.f32 %v192, %v191
  %v194 = vrcp.pop %v193
  %v195 = vmul.f32 %v193, %v194
  %v196 = vsub.f32 1.0, %v195
  %v197 = vmul.f32 %v194, %v196
  %v198 = vadd.f32 %v194, %v197
  %vm199 = vweird.f32 %v193
  %vm200 = vweird.f32 %v194
  %vm201 = vmor %vm199, %vm200
  %v202 = vsel %vm201, %v194, %v198
  %v203 = vand.u32 2147483647, %v193
  %vm204 = vcmp.eq.f32.partialorder %v203, 8.507059e+37
  %v205 = vand.u32 %v193, 2147483648
  %v206 = vor.u32 1.1754944e-38, %v205
  %v207 = vsel %vm204, %v206, %v202
  %v208 = vmul.f32 1.0, %v207
  %v209 = vmul.f32 %v185, %v208
  %v210 = vmul.f32 %v188, %v208
  %v211 = vmul.f32 %v191, %v208
  %v212 = vmul.f32 %v209, %v55
  %v213 = vmul.f32 %v210, %v55
  %215 = vrot.lane.b32.xlu0 %v213, 112
  %v216 = vpop.permute.xlu0 %215
  %v218 = vadd.f32 %v212, %v216
  %v219 = vmul.f32 %v211, %v75
  %221 = vrot.lane.b32.xlu0 %v219, 96
  %v222 = vpop.permute.xlu0 %221
  %v224 = vadd.f32 %v218, %v222
  %v225 = vsel %vm147, %v209, %v210
  %v226 = vsel %vm149, %v225, %v211
  %v227 = vsel %vm151, %v226, 0.0
  %228 = vrot.lane.b32.xlu0 %v55, 112
  %v229 = vpop.permute.xlu0 %228
  %v231 = vmul.f32 %v55, %v229
  %233 = vrot.lane.b32.xlu0 %v231, 96
  %v234 = vpop.permute.xlu0 %233
  %v236 = vsel %vm82, %v234, 0.0
  %237 = vadd.xlane.f32.xlu0 %v236
  %v238 = vpop.xlane.xlu0 %237
  %v239 = vmul.f32 %v238, 0.25
  %240 = vrot.lane.b32.xlu0 %v156, 96
  %v241 = vpop.permute.xlu0 %240
  %v243 = vsel %vm82, %v241, 0.0
  %244 = vadd.xlane.f32.xlu0 %v243
  %v245 = vpop.xlane.xlu0 %244
  %v246 = vmul.f32 %v245, 0.25
  %247 = vrot.lane.b32.xlu0 %v81, 96
  %v248 = vpop.permute.xlu0 %247
  %v250 = vsel %vm82, %v248, 0.0
  %251 = vadd.xlane.f32.xlu0 %v250
  %v252 = vpop.xlane.xlu0 %251
  %v253 = vmul.f32 %v252, 0.25
  %v254 = vmax.f32 %v239, %v246
  %v255 = vmax.f32 %v254, %v253
  %v256 = vsub.f32 %v239, %v255
  %v257 = vmul.f32 %v256, 1.442695
  %v258 = vpow.pop %v257
  %v259 = vsub.f32 %v246, %v255
  %v260 = vmul.f32 %v259, 1.442695
  %v261 = vpow.pop %v260
  %v262 = vsub.f32 %v253, %v255
  %v263 = vmul.f32 %v262, 1.442695
  %v264 = vpow.pop %v263
  %v265 = vadd.f32 %v258, %v261
  %v266 = vadd.f32 %v265, %v264
  %v267 = vrcp.pop %v266
  %v268 = vmul.f32 %v266, %v267
  %v269 = vsub.f32 1.0, %v268
  %v270 = vmul.f32 %v267, %v269
  %v271 = vadd.f32 %v267, %v270
  %vm272 = vweird.f32 %v266
  %vm273 = vweird.f32 %v267
  %vm274 = vmor %vm272, %vm273
  %v275 = vsel %vm274, %v267, %v271
  %v276 = vand.u32 2147483647, %v266
  %vm277 = vcmp.eq.f32.partialorder %v276, 8.507059e+37
  %v278 = vand.u32 %v266, 2147483648
  %v279 = vor.u32 1.1754944e-38, %v278
  %v280 = vsel %vm277, %v279, %v275
  %v281 = vmul.f32 1.0, %v280
  %v282 = vmul.f32 %v258, %v281
  %v283 = vmul.f32 %v261, %v281
  %v284 = vmul.f32 %v264, %v281
  %v285 = vmul.f32 %v282, %v55
  %v286 = vmul.f32 %v283, %v55
  %288 = vrot.lane.b32.xlu0 %v286, 112
  %v289 = vpop.permute.xlu0 %288
  %v291 = vadd.f32 %v285, %v289
  %v292 = vmul.f32 %v284, %v75
  %294 = vrot.lane.b32.xlu0 %v292, 96
  %v295 = vpop.permute.xlu0 %294
  %v297 = vadd.f32 %v291, %v295
  %v298 = vsel %vm147, %v282, %v283
  %v299 = vsel %vm149, %v298, %v284
  %v300 = vsel %vm151, %v299, 0.0
  %302 = vrot.lane.b32.xlu0 %v146, 32
  %v303 = vpop.permute.xlu0 %302
  %306 = vrot.lane.b32.xlu0 %v224, 48
  %v307 = vpop.permute.xlu0 %306
  %310 = vrot.lane.b32.xlu0 %v297, 64
  %v311 = vpop.permute.xlu0 %310
  %314 = vrot.lane.b32.xlu0 %v152, 48
  %v315 = vpop.permute.xlu0 %314
  %318 = vrot.lane.b32.xlu0 %v227, 54
  %v319 = vpop.permute.xlu0 %318
  %322 = vrot.lane.b32.xlu0 %v300, 60
  %v323 = vpop.permute.xlu0 %322
  %v325 = vsel %vm82, %v303, %v307
  %vm326 = vcmask 261120
  %v327 = vsel %vm326, %v325, %v311
  %v328 = vsel %vm33, %v327, %v315
  %vm329 = vcmask 441344
  %v330 = vsel %vm329, %v328, %v319
  %vm331 = vcmask 490496
  %v332 = vsel %vm331, %v330, %v323
  %vm333 = vcmask 539648
  %v334 = vsel %vm333, %v332, 0.0
  %335 = vst [vmem:[%s3] sm:$0xff] %v334
  // Predicated region
  $region14: #{all_in_one_forward.3} parent=0 // pred_check
    _
  $region15: #{all_in_one_forward.3} parent=0 // pred_check_branch
    %337 = sbr.rel (0) target = $region17
  $region16: #{all_in_one_forward.3} parent=0 // pred_region
    _
  $region17: #{all_in_one_forward.3} parent=0 // pred_fallthru
    _
  // Predicated region
  $region18: #{all_in_one_forward.3} parent=0 // pred_check
    _
  $region19: #{all_in_one_forward.3} parent=0 // pred_check_branch
    %339 = sbr.rel (0) target = $region21
  $region20: #{all_in_one_forward.3} parent=0 // pred_region
    _
  $region21: #{all_in_one_forward.3} parent=0 // pred_fallthru
    _

// kernel: all_in_one_forward.2
$region0: #{all_in_one_forward.2}
  #allocation0 [shape = 'u32[]', space=smem, size = 0x4, offset = 0x4, fixed_abs, tag = 'smem constant byte address 0x4 - core index']
  #allocation1 [shape = 'u32[72,128]{1,0:T(1,128)}', space=vmem, size = 0x9000, scoped, tag = 'internal scratch']
  %s0 = inlined_call_operand.vmem [shape: bf16[8,768], index: 0, kind: input, shape index: {}]
  %s1 = inlined_call_operand.vmem [shape: bf16[8,768], index: 1, kind: input, shape index: {}]
  %s2 = inlined_call_operand.vmem [shape: f32[8,17], index: 2, kind: input, shape index: {}]
  %s3 = inlined_call_operand.vmem [shape: bf16[768,32], index: 3, kind: input, shape index: {}]
  %s4 = inlined_call_operand.vmem [shape: bf16[768,32], index: 4, kind: input, shape index: {}]
  %s5 = inlined_call_operand.vmem [shape: f32[17,96], index: 5, kind: input, shape index: {}]
  %s6 = inlined_call_operand.vmem [shape: f32[1,160], index: 6, kind: input, shape index: {}]
  %s7 = inlined_call_operand.vmem [shape: f32[160,48], index: 7, kind: input, shape index: {}]
  %s8 = inlined_call_operand.vmem [shape: f32[1,48], index: 8, kind: input, shape index: {}]
  %s9 = inlined_call_operand.vmem [shape: f32[8,48], index: 9, kind: output, shape index: {}]
  %s10 = sld [smem:[#allocation0]]
  $region46: #{all_in_one_forward.2} parent=0
    _
  %s12 = ssub.s32 1, %s10
  %s13 = scalar_select 0, %s12, %s10
  // Predicated region
  $region2: #{all_in_one_forward.2} parent=0 // pred_check
    _
  $region3: #{all_in_one_forward.2} parent=0 // pred_check_branch
    %15 = sbr.rel (0) target = $region5
  $region4: #{all_in_one_forward.2} parent=0 // pred_region
    _
  $region5: #{all_in_one_forward.2} parent=0 // pred_fallthru
    _
  // Predicated region
  $region6: #{all_in_one_forward.2} parent=0 // pred_check
    _
  $region7: #{all_in_one_forward.2} parent=0 // pred_check_branch
    %17 = sbr.rel (0) target = $region9
  $region8: #{all_in_one_forward.2} parent=0 // pred_region
    _
  $region9: #{all_in_one_forward.2} parent=0 // pred_fallthru
    _
  // Predicated region
  $region10: #{all_in_one_forward.2} parent=0 // pred_check
    _
  $region11: #{all_in_one_forward.2} parent=0 // pred_check_branch
    %19 = sbr.rel (0) target = $region13
  $region12: #{all_in_one_forward.2} parent=0 // pred_region
    _
  $region13: #{all_in_one_forward.2} parent=0 // pred_fallthru
    _
  // Predicated region
  $region14: #{all_in_one_forward.2} parent=0 // pred_check
    _
  $region15: #{all_in_one_forward.2} parent=0 // pred_check_branch
    %21 = sbr.rel (0) target = $region17
  $region16: #{all_in_one_forward.2} parent=0 // pred_region
    _
  $region17: #{all_in_one_forward.2} parent=0 // pred_fallthru
    _
  // Predicated region
  $region18: #{all_in_one_forward.2} parent=0 // pred_check
    _
  $region19: #{all_in_one_forward.2} parent=0 // pred_check_branch
    %23 = sbr.rel (0) target = $region21
  $region20: #{all_in_one_forward.2} parent=0 // pred_region
    _
  $region21: #{all_in_one_forward.2} parent=0 // pred_fallthru
    _
  // Predicated region
  $region22: #{all_in_one_forward.2} parent=0 // pred_check
    _
  $region23: #{all_in_one_forward.2} parent=0 // pred_check_branch
    %25 = sbr.rel (0) target = $region25
  $region24: #{all_in_one_forward.2} parent=0 // pred_region
    _
  $region25: #{all_in_one_forward.2} parent=0 // pred_fallthru
    _
  // Predicated region
  $region26: #{all_in_one_forward.2} parent=0 // pred_check
    _
  $region27: #{all_in_one_forward.2} parent=0 // pred_check_branch
    %27 = sbr.rel (0) target = $region29
  $region28: #{all_in_one_forward.2} parent=0 // pred_region
    _
  $region29: #{all_in_one_forward.2} parent=0 // pred_fallthru
    _
  // Predicated region
  $region30: #{all_in_one_forward.2} parent=0 // pred_check
    _
  $region31: #{all_in_one_forward.2} parent=0 // pred_check_branch
    %29 = sbr.rel (0) target = $region33
  $region32: #{all_in_one_forward.2} parent=0 // pred_region
    _
  $region33: #{all_in_one_forward.2} parent=0 // pred_fallthru
    _
  // Predicated region
  $region34: #{all_in_one_forward.2} parent=0 // pred_check
    _
  $region35: #{all_in_one_forward.2} parent=0 // pred_check_branch
    %31 = sbr.rel (0) target = $region37
  $region36: #{all_in_one_forward.2} parent=0 // pred_region
    _
  $region37: #{all_in_one_forward.2} parent=0 // pred_fallthru
    _
  %v32 = vld [vmem:[%s6] sm:$0x3]
  %v33 = vld [vmem:[%s0] sm:$0xff]
  %v34 = vld [vmem:[%s0 + $0x8] sm:$0xff]
  %v35 = vld [vmem:[%s0 + $0x10] sm:$0xff]
  %v36 = vld [vmem:[%s3] sm:$0xf]
  %v37 = vld [vmem:[%s3 + $0x4] sm:$0xf]
  %v38 = vld [vmem:[%s3 + $0x8] sm:$0xf]
  %v39 = vld [vmem:[%s3 + $0xc] sm:$0xf]
  %v40 = vld [vmem:[%s3 + $0x10] sm:$0xf]
  %v41 = vld [vmem:[%s3 + $0x14] sm:$0xf]
  %v42 = vld [vmem:[%s3 + $0x18] sm:$0xf]
  %v43 = vld [vmem:[%s3 + $0x1c] sm:$0xf]
  %v44 = vld [vmem:[%s3 + $0x20] sm:$0xf]
  %v45 = vld [vmem:[%s3 + $0x24] sm:$0xf]
  %v46 = vld [vmem:[%s3 + $0x28] sm:$0xf]
  %v47 = vld [vmem:[%s3 + $0x2c] sm:$0xf]
  %v48 = vld [vmem:[%s3 + $0x30] sm:$0xf]
  %v49 = vld [vmem:[%s3 + $0x34] sm:$0xf]
  %v50 = vld [vmem:[%s3 + $0x38] sm:$0xf]
  %v51 = vld [vmem:[%s3 + $0x3c] sm:$0xf]
  %v52 = vld [vmem:[%s3 + $0x40] sm:$0xf]
  %v53 = vld [vmem:[%s3 + $0x44] sm:$0xf]
  %v54 = vld [vmem:[%s3 + $0x48] sm:$0xf]
  %v55 = vld [vmem:[%s3 + $0x4c] sm:$0xf]
  %v56 = vld [vmem:[%s3 + $0x50] sm:$0xf]
  %v57 = vld [vmem:[%s3 + $0x54] sm:$0xf]
  %v58 = vld [vmem:[%s3 + $0x58] sm:$0xf]
  %v59 = vld [vmem:[%s3 + $0x5c] sm:$0xf]
  %v60 = vld [vmem:[%s3 + $0x60] sm:$0xf]
  %v61 = vld [vmem:[%s3 + $0x64] sm:$0xf]
  %v62 = vld [vmem:[%s3 + $0x68] sm:$0xf]
  %v63 = vld [vmem:[%s3 + $0x6c] sm:$0xf]
  %v64 = vld [vmem:[%s3 + $0x70] sm:$0xf]
  %v65 = vld [vmem:[%s3 + $0x74] sm:$0xf]
  %v66 = vld [vmem:[%s3 + $0x78] sm:$0xf]
  %v67 = vld [vmem:[%s3 + $0x7c] sm:$0xf]
  %v68 = vld [vmem:[%s3 + $0x80] sm:$0xf]
  %v69 = vld [vmem:[%s3 + $0x84] sm:$0xf]
  %v70 = vld [vmem:[%s3 + $0x88] sm:$0xf]
  %v71 = vld [vmem:[%s3 + $0x8c] sm:$0xf]
  %v72 = vld [vmem:[%s3 + $0x90] sm:$0xf]
  %v73 = vld [vmem:[%s3 + $0x94] sm:$0xf]
  %v74 = vld [vmem:[%s3 + $0x98] sm:$0xf]
  %v75 = vld [vmem:[%s3 + $0x9c] sm:$0xf]
  %v76 = vld [vmem:[%s3 + $0xa0] sm:$0xf]
  %v77 = vld [vmem:[%s3 + $0xa4] sm:$0xf]
  %v78 = vld [vmem:[%s3 + $0xa8] sm:$0xf]
  %v79 = vld [vmem:[%s3 + $0xac] sm:$0xf]
  %v80 = vld [vmem:[%s3 + $0xb0] sm:$0xf]
  %v81 = vld [vmem:[%s3 + $0xb4] sm:$0xf]
  %v82 = vld [vmem:[%s3 + $0xb8] sm:$0xf]
  %v83 = vld [vmem:[%s3 + $0xbc] sm:$0xf]
  %v84 = vld [vmem:[%s3 + $0xc0] sm:$0xf]
  %v85 = vld [vmem:[%s3 + $0xc4] sm:$0xf]
  %v86 = vld [vmem:[%s3 + $0xc8] sm:$0xf]
  %v87 = vld [vmem:[%s3 + $0xcc] sm:$0xf]
  %v88 = vld [vmem:[%s3 + $0xd0] sm:$0xf]
  %v89 = vld [vmem:[%s3 + $0xd4] sm:$0xf]
  %v90 = vld [vmem:[%s3 + $0xd8] sm:$0xf]
  %v91 = vld [vmem:[%s3 + $0xdc] sm:$0xf]
  %v92 = vld [vmem:[%s3 + $0xe0] sm:$0xf]
  %v93 = vld [vmem:[%s3 + $0xe4] sm:$0xf]
  %v94 = vld [vmem:[%s3 + $0xe8] sm:$0xf]
  %v95 = vld [vmem:[%s3 + $0xec] sm:$0xf]
  %v96 = vld [vmem:[%s3 + $0xf0] sm:$0xf]
  %v97 = vld [vmem:[%s3 + $0xf4] sm:$0xf]
  %v98 = vld [vmem:[%s3 + $0xf8] sm:$0xf]
  %v99 = vld [vmem:[%s3 + $0xfc] sm:$0xf]
  %v100 = vld [vmem:[%s3 + $0x100] sm:$0xf]
  %v101 = vld [vmem:[%s3 + $0x104] sm:$0xf]
  %v102 = vld [vmem:[%s3 + $0x108] sm:$0xf]
  %v103 = vld [vmem:[%s3 + $0x10c] sm:$0xf]
  %v104 = vld [vmem:[%s3 + $0x110] sm:$0xf]
  %v105 = vld [vmem:[%s3 + $0x114] sm:$0xf]
  %v106 = vld [vmem:[%s3 + $0x118] sm:$0xf]
  %v107 = vld [vmem:[%s3 + $0x11c] sm:$0xf]
  %v108 = vld [vmem:[%s3 + $0x120] sm:$0xf]
  %v109 = vld [vmem:[%s3 + $0x124] sm:$0xf]
  %v110 = vld [vmem:[%s3 + $0x128] sm:$0xf]
  %v111 = vld [vmem:[%s3 + $0x12c] sm:$0xf]
  %v112 = vld [vmem:[%s3 + $0x130] sm:$0xf]
  %v113 = vld [vmem:[%s3 + $0x134] sm:$0xf]
  %v114 = vld [vmem:[%s3 + $0x138] sm:$0xf]
  %v115 = vld [vmem:[%s3 + $0x13c] sm:$0xf]
  %v116 = vld [vmem:[%s3 + $0x140] sm:$0xf]
  %v117 = vld [vmem:[%s3 + $0x144] sm:$0xf]
  %v118 = vld [vmem:[%s3 + $0x148] sm:$0xf]
  %v119 = vld [vmem:[%s3 + $0x14c] sm:$0xf]
  %v120 = vld [vmem:[%s3 + $0x150] sm:$0xf]
  %v121 = vld [vmem:[%s3 + $0x154] sm:$0xf]
  %v122 = vld [vmem:[%s3 + $0x158] sm:$0xf]
  %v123 = vld [vmem:[%s3 + $0x15c] sm:$0xf]
  %v124 = vld [vmem:[%s3 + $0x160] sm:$0xf]
  %v125 = vld [vmem:[%s3 + $0x164] sm:$0xf]
  %v126 = vld [vmem:[%s3 + $0x168] sm:$0xf]
  %v127 = vld [vmem:[%s3 + $0x16c] sm:$0xf]
  %v128 = vld [vmem:[%s3 + $0x170] sm:$0xf]
  %v129 = vld [vmem:[%s3 + $0x174] sm:$0xf]
  %v130 = vld [vmem:[%s3 + $0x178] sm:$0xf]
  %v131 = vld [vmem:[%s3 + $0x17c] sm:$0xf]
  %v133 = vperm.slane %v32, 0
  %v138 = vunpack.c.l.b16 %v33
  %v139 = vunpack.c.h.b16 %v33
  %v140 = vunpack.c.l.b16 %v34
  %v141 = vunpack.c.h.b16 %v34
  %v142 = vunpack.c.l.b16 %v35
  %v143 = vunpack.c.h.b16 %v35
  %v144 = vpack.c.b16 %v138, %v138
  %v145 = vpack.c.b16 %v139, %v139
  %v146 = vpack.c.b16 %v140, %v140
  %v147 = vpack.c.b16 %v141, %v141
  %v148 = vpack.c.b16 %v142, %v142
  %v149 = vpack.c.b16 %v143, %v143
  %v252 = vunpack.c.l.b16 %v36
  %v253 = vunpack.c.l.b16 %v37
  %v254 = vunpack.c.l.b16 %v38
  %v255 = vunpack.c.l.b16 %v39
  %v256 = vunpack.c.l.b16 %v40
  %v257 = vunpack.c.l.b16 %v41
  %v258 = vunpack.c.l.b16 %v42
  %v259 = vunpack.c.l.b16 %v43
  %v260 = vunpack.c.l.b16 %v44
  %v261 = vunpack.c.l.b16 %v45
  %v262 = vunpack.c.l.b16 %v46
  %v263 = vunpack.c.l.b16 %v47
  %v264 = vunpack.c.l.b16 %v48
  %v265 = vunpack.c.l.b16 %v49
  %v266 = vunpack.c.l.b16 %v50
  %v267 = vunpack.c.l.b16 %v51
  %v268 = vunpack.c.l.b16 %v52
  %v269 = vunpack.c.l.b16 %v53
  %v270 = vunpack.c.l.b16 %v54
  %v271 = vunpack.c.l.b16 %v55
  %v272 = vunpack.c.l.b16 %v56
  %v273 = vunpack.c.l.b16 %v57
  %v274 = vunpack.c.l.b16 %v58
  %v275 = vunpack.c.l.b16 %v59
  %v276 = vunpack.c.l.b16 %v60
  %v277 = vunpack.c.l.b16 %v61
  %v278 = vunpack.c.l.b16 %v62
  %v279 = vunpack.c.l.b16 %v63
  %v280 = vunpack.c.l.b16 %v64
  %v281 = vunpack.c.l.b16 %v65
  %v282 = vunpack.c.l.b16 %v66
  %v283 = vunpack.c.l.b16 %v67
  %v284 = vunpack.c.l.b16 %v68
  %v285 = vunpack.c.l.b16 %v69
  %v286 = vunpack.c.l.b16 %v70
  %v287 = vunpack.c.l.b16 %v71
  %v288 = vunpack.c.l.b16 %v72
  %v289 = vunpack.c.l.b16 %v73
  %v290 = vunpack.c.l.b16 %v74
  %v291 = vunpack.c.l.b16 %v75
  %v292 = vunpack.c.l.b16 %v76
  %v293 = vunpack.c.l.b16 %v77
  %v294 = vunpack.c.l.b16 %v78
  %v295 = vunpack.c.l.b16 %v79
  %v296 = vunpack.c.l.b16 %v80
  %v297 = vunpack.c.l.b16 %v81
  %v298 = vunpack.c.l.b16 %v82
  %v299 = vunpack.c.l.b16 %v83
  %v300 = vunpack.c.l.b16 %v84
  %v301 = vunpack.c.l.b16 %v85
  %v302 = vunpack.c.l.b16 %v86
  %v303 = vunpack.c.l.b16 %v87
  %v304 = vunpack.c.l.b16 %v88
  %v305 = vunpack.c.l.b16 %v89
  %v306 = vunpack.c.l.b16 %v90
  %v307 = vunpack.c.l.b16 %v91
  %v308 = vunpack.c.l.b16 %v92
  %v309 = vunpack.c.l.b16 %v93
  %v310 = vunpack.c.l.b16 %v94
  %v311 = vunpack.c.l.b16 %v95
  %v312 = vunpack.c.l.b16 %v96
  %v313 = vunpack.c.l.b16 %v97
  %v314 = vunpack.c.l.b16 %v98
  %v315 = vunpack.c.l.b16 %v99
  %v316 = vunpack.c.l.b16 %v100
  %v317 = vunpack.c.l.b16 %v101
  %v318 = vunpack.c.l.b16 %v102
  %v319 = vunpack.c.l.b16 %v103
  %v320 = vunpack.c.l.b16 %v104
  %v321 = vunpack.c.l.b16 %v105
  %v322 = vunpack.c.l.b16 %v106
  %v323 = vunpack.c.l.b16 %v107
  %v324 = vunpack.c.l.b16 %v108
  %v325 = vunpack.c.l.b16 %v109
  %v326 = vunpack.c.l.b16 %v110
  %v327 = vunpack.c.l.b16 %v111
  %v328 = vunpack.c.l.b16 %v112
  %v329 = vunpack.c.l.b16 %v113
  %v330 = vunpack.c.l.b16 %v114
  %v331 = vunpack.c.l.b16 %v115
  %v332 = vunpack.c.l.b16 %v116
  %v333 = vunpack.c.l.b16 %v117
  %v334 = vunpack.c.l.b16 %v118
  %v335 = vunpack.c.l.b16 %v119
  %v336 = vunpack.c.l.b16 %v120
  %v337 = vunpack.c.l.b16 %v121
  %v338 = vunpack.c.l.b16 %v122
  %v339 = vunpack.c.l.b16 %v123
  %v340 = vunpack.c.l.b16 %v124
  %v341 = vunpack.c.l.b16 %v125
  %v342 = vunpack.c.l.b16 %v126
  %v343 = vunpack.c.l.b16 %v127
  %v344 = vunpack.c.l.b16 %v128
  %v345 = vunpack.c.l.b16 %v129
  %v346 = vunpack.c.l.b16 %v130
  %v347 = vunpack.c.l.b16 %v131
  %v348 = vpack.c.b16 %v253, %v252
  %v349 = vpack.c.b16 %v255, %v254
  %v350 = vpack.c.b16 %v257, %v256
  %v351 = vpack.c.b16 %v259, %v258
  %v352 = vpack.c.b16 %v261, %v260
  %v353 = vpack.c.b16 %v263, %v262
  %v354 = vpack.c.b16 %v265, %v264
  %v355 = vpack.c.b16 %v267, %v266
  %v356 = vpack.c.b16 %v269, %v268
  %v357 = vpack.c.b16 %v271, %v270
  %v358 = vpack.c.b16 %v273, %v272
  %v359 = vpack.c.b16 %v275, %v274
  %v360 = vpack.c.b16 %v277, %v276
  %v361 = vpack.c.b16 %v279, %v278
  %v362 = vpack.c.b16 %v281, %v280
  %v363 = vpack.c.b16 %v283, %v282
  %v364 = vpack.c.b16 %v285, %v284
  %v365 = vpack.c.b16 %v287, %v286
  %v366 = vpack.c.b16 %v289, %v288
  %v367 = vpack.c.b16 %v291, %v290
  %v368 = vpack.c.b16 %v293, %v292
  %v369 = vpack.c.b16 %v295, %v294
  %v370 = vpack.c.b16 %v297, %v296
  %v371 = vpack.c.b16 %v299, %v298
  %v372 = vpack.c.b16 %v301, %v300
  %v373 = vpack.c.b16 %v303, %v302
  %v374 = vpack.c.b16 %v305, %v304
  %v375 = vpack.c.b16 %v307, %v306
  %v376 = vpack.c.b16 %v309, %v308
  %v377 = vpack.c.b16 %v311, %v310
  %v378 = vpack.c.b16 %v313, %v312
  %v379 = vpack.c.b16 %v315, %v314
  %v380 = vpack.c.b16 %v317, %v316
  %v381 = vpack.c.b16 %v319, %v318
  %v382 = vpack.c.b16 %v321, %v320
  %v383 = vpack.c.b16 %v323, %v322
  %v384 = vpack.c.b16 %v325, %v324
  %v385 = vpack.c.b16 %v327, %v326
  %v386 = vpack.c.b16 %v329, %v328
  %v387 = vpack.c.b16 %v331, %v330
  %v388 = vpack.c.b16 %v333, %v332
  %v389 = vpack.c.b16 %v335, %v334
  %v390 = vpack.c.b16 %v337, %v336
  %v391 = vpack.c.b16 %v339, %v338
  %v392 = vpack.c.b16 %v341, %v340
  %v393 = vpack.c.b16 %v343, %v342
  %v394 = vpack.c.b16 %v345, %v344
  %v395 = vpack.c.b16 %v347, %v346
  %444 = vmatpush.bf16.msra.mxu0 %v355
  %445 = vmatpush.bf16.msra.mxu0 %v354
  %446 = vmatpush.bf16.msra.mxu0 %v353
  %447 = vmatpush.bf16.msra.mxu0 %v352
  %448 = vmatpush.bf16.msra.mxu0 %v351
  %449 = vmatpush.bf16.msra.mxu0 %v350
  %450 = vmatpush.bf16.msra.mxu0 %v349
  %451 = vmatpush.bf16.msra.mxu0 %v348
  %452 = vmatmul.bf16.gmra.mxu0 %v144
  %v453 = vpop.f32.mrf.mxu0
  %v454 = vadd.f32 %v133, %v453
  %v455 = vpop.f32.mrf.mxu0
  %456 = vdwg.mxu0
  %457 = vmatpush.bf16.msra.mxu0 %v363
  %458 = vmatpush.bf16.msra.mxu0 %v362
  %459 = vmatpush.bf16.msra.mxu0 %v361
  %460 = vmatpush.bf16.msra.mxu0 %v360
  %461 = vmatpush.bf16.msra.mxu0 %v359
  %462 = vmatpush.bf16.msra.mxu0 %v358
  %463 = vmatpush.bf16.msra.mxu0 %v357
  %464 = vmatpush.bf16.msra.mxu0 %v356
  %465 = vmatmul.bf16.gmra.mxu0 %v145
  %v466 = vpop.f32.mrf.mxu0
  %v467 = vadd.f32 %v454, %v466
  %v468 = vpop.f32.mrf.mxu0
  %469 = vdwg.mxu0
  %470 = vmatpush.bf16.msra.mxu0 %v371
  %471 = vmatpush.bf16.msra.mxu0 %v370
  %472 = vmatpush.bf16.msra.mxu0 %v369
  %473 = vmatpush.bf16.msra.mxu0 %v368
  %474 = vmatpush.bf16.msra.mxu0 %v367
  %475 = vmatpush.bf16.msra.mxu0 %v366
  %476 = vmatpush.bf16.msra.mxu0 %v365
  %477 = vmatpush.bf16.msra.mxu0 %v364
  %478 = vmatmul.bf16.gmra.mxu0 %v146
  %v479 = vpop.f32.mrf.mxu0
  %v480 = vadd.f32 %v467, %v479
  %v481 = vpop.f32.mrf.mxu0
  %482 = vdwg.mxu0
  %483 = vmatpush.bf16.msra.mxu0 %v379
  %484 = vmatpush.bf16.msra.mxu0 %v378
  %485 = vmatpush.bf16.msra.mxu0 %v377
  %486 = vmatpush.bf16.msra.mxu0 %v376
  %487 = vmatpush.bf16.msra.mxu0 %v375
  %488 = vmatpush.bf16.msra.mxu0 %v374
  %489 = vmatpush.bf16.msra.mxu0 %v373
  %490 = vmatpush.bf16.msra.mxu0 %v372
  %491 = vmatmul.bf16.gmra.mxu0 %v147
  %v492 = vpop.f32.mrf.mxu0
  %v493 = vadd.f32 %v480, %v492
  %v494 = vpop.f32.mrf.mxu0
  %495 = vdwg.mxu0
  %496 = vmatpush.bf16.msra.mxu0 %v387
  %497 = vmatpush.bf16.msra.mxu0 %v386
  %498 = vmatpush.bf16.msra.mxu0 %v385
  %499 = vmatpush.bf16.msra.mxu0 %v384
  %500 = vmatpush.bf16.msra.mxu0 %v383
  %501 = vmatpush.bf16.msra.mxu0 %v382
  %502 = vmatpush.bf16.msra.mxu0 %v381
  %503 = vmatpush.bf16.msra.mxu0 %v380
  %504 = vmatmul.bf16.gmra.mxu0 %v148
  %v505 = vpop.f32.mrf.mxu0
  %v506 = vadd.f32 %v493, %v505
  %v507 = vpop.f32.mrf.mxu0
  %508 = vdwg.mxu0
  %509 = vmatpush.bf16.msra.mxu0 %v395
  %510 = vmatpush.bf16.msra.mxu0 %v394
  %511 = vmatpush.bf16.msra.mxu0 %v393
  %512 = vmatpush.bf16.msra.mxu0 %v392
  %513 = vmatpush.bf16.msra.mxu0 %v391
  %514 = vmatpush.bf16.msra.mxu0 %v390
  %515 = vmatpush.bf16.msra.mxu0 %v389
  %516 = vmatpush.bf16.msra.mxu0 %v388
  %517 = vmatmul.bf16.gmra.mxu0 %v149
  %v518 = vpop.f32.mrf.mxu0
  %v519 = vadd.f32 %v506, %v518
  %v520 = vpop.f32.mrf.mxu0
  %521 = vdwg.mxu0
  %vm522 = vcmp.ge.f32.partialorder %v519, 0.0
  %v523 = vmul.f32 %v519, 0.01
  %v524 = vsel %vm522, %v519, %v523
  %v525 = vld [vmem:[%s1] sm:$0xff]
  %v526 = vld [vmem:[%s1 + $0x8] sm:$0xff]
  %v527 = vld [vmem:[%s1 + $0x10] sm:$0xff]
  %v528 = vld [vmem:[%s4] sm:$0xf]
  %v529 = vld [vmem:[%s4 + $0x4] sm:$0xf]
  %v530 = vld [vmem:[%s4 + $0x8] sm:$0xf]
  %v531 = vld [vmem:[%s4 + $0xc] sm:$0xf]
  %v532 = vld [vmem:[%s4 + $0x10] sm:$0xf]
  %v533 = vld [vmem:[%s4 + $0x14] sm:$0xf]
  %v534 = vld [vmem:[%s4 + $0x18] sm:$0xf]
  %v535 = vld [vmem:[%s4 + $0x1c] sm:$0xf]
  %v536 = vld [vmem:[%s4 + $0x20] sm:$0xf]
  %v537 = vld [vmem:[%s4 + $0x24] sm:$0xf]
  %v538 = vld [vmem:[%s4 + $0x28] sm:$0xf]
  %v539 = vld [vmem:[%s4 + $0x2c] sm:$0xf]
  %v540 = vld [vmem:[%s4 + $0x30] sm:$0xf]
  %v541 = vld [vmem:[%s4 + $0x34] sm:$0xf]
  %v542 = vld [vmem:[%s4 + $0x38] sm:$0xf]
  %v543 = vld [vmem:[%s4 + $0x3c] sm:$0xf]
  %v544 = vld [vmem:[%s4 + $0x40] sm:$0xf]
  %v545 = vld [vmem:[%s4 + $0x44] sm:$0xf]
  %v546 = vld [vmem:[%s4 + $0x48] sm:$0xf]
  %v547 = vld [vmem:[%s4 + $0x4c] sm:$0xf]
  %v548 = vld [vmem:[%s4 + $0x50] sm:$0xf]
  %v549 = vld [vmem:[%s4 + $0x54] sm:$0xf]
  %v550 = vld [vmem:[%s4 + $0x58] sm:$0xf]
  %v551 = vld [vmem:[%s4 + $0x5c] sm:$0xf]
  %v552 = vld [vmem:[%s4 + $0x60] sm:$0xf]
  %v553 = vld [vmem:[%s4 + $0x64] sm:$0xf]
  %v554 = vld [vmem:[%s4 + $0x68] sm:$0xf]
  %v555 = vld [vmem:[%s4 + $0x6c] sm:$0xf]
  %v556 = vld [vmem:[%s4 + $0x70] sm:$0xf]
  %v557 = vld [vmem:[%s4 + $0x74] sm:$0xf]
  %v558 = vld [vmem:[%s4 + $0x78] sm:$0xf]
  %v559 = vld [vmem:[%s4 + $0x7c] sm:$0xf]
  %v560 = vld [vmem:[%s4 + $0x80] sm:$0xf]
  %v561 = vld [vmem:[%s4 + $0x84] sm:$0xf]
  %v562 = vld [vmem:[%s4 + $0x88] sm:$0xf]
  %v563 = vld [vmem:[%s4 + $0x8c] sm:$0xf]
  %v564 = vld [vmem:[%s4 + $0x90] sm:$0xf]
  %v565 = vld [vmem:[%s4 + $0x94] sm:$0xf]
  %v566 = vld [vmem:[%s4 + $0x98] sm:$0xf]
  %v567 = vld [vmem:[%s4 + $0x9c] sm:$0xf]
  %v568 = vld [vmem:[%s4 + $0xa0] sm:$0xf]
  %v569 = vld [vmem:[%s4 + $0xa4] sm:$0xf]
  %v570 = vld [vmem:[%s4 + $0xa8] sm:$0xf]
  %v571 = vld [vmem:[%s4 + $0xac] sm:$0xf]
  %v572 = vld [vmem:[%s4 + $0xb0] sm:$0xf]
  %v573 = vld [vmem:[%s4 + $0xb4] sm:$0xf]
  %v574 = vld [vmem:[%s4 + $0xb8] sm:$0xf]
  %v575 = vld [vmem:[%s4 + $0xbc] sm:$0xf]
  %v576 = vld [vmem:[%s4 + $0xc0] sm:$0xf]
  %v577 = vld [vmem:[%s4 + $0xc4] sm:$0xf]
  %v578 = vld [vmem:[%s4 + $0xc8] sm:$0xf]
  %v579 = vld [vmem:[%s4 + $0xcc] sm:$0xf]
  %v580 = vld [vmem:[%s4 + $0xd0] sm:$0xf]
  %v581 = vld [vmem:[%s4 + $0xd4] sm:$0xf]
  %v582 = vld [vmem:[%s4 + $0xd8] sm:$0xf]
  %v583 = vld [vmem:[%s4 + $0xdc] sm:$0xf]
  %v584 = vld [vmem:[%s4 + $0xe0] sm:$0xf]
  %v585 = vld [vmem:[%s4 + $0xe4] sm:$0xf]
  %v586 = vld [vmem:[%s4 + $0xe8] sm:$0xf]
  %v587 = vld [vmem:[%s4 + $0xec] sm:$0xf]
  %v588 = vld [vmem:[%s4 + $0xf0] sm:$0xf]
  %v589 = vld [vmem:[%s4 + $0xf4] sm:$0xf]
  %v590 = vld [vmem:[%s4 + $0xf8] sm:$0xf]
  %v591 = vld [vmem:[%s4 + $0xfc] sm:$0xf]
  %v592 = vld [vmem:[%s4 + $0x100] sm:$0xf]
  %v593 = vld [vmem:[%s4 + $0x104] sm:$0xf]
  %v594 = vld [vmem:[%s4 + $0x108] sm:$0xf]
  %v595 = vld [vmem:[%s4 + $0x10c] sm:$0xf]
  %v596 = vld [vmem:[%s4 + $0x110] sm:$0xf]
  %v597 = vld [vmem:[%s4 + $0x114] sm:$0xf]
  %v598 = vld [vmem:[%s4 + $0x118] sm:$0xf]
  %v599 = vld [vmem:[%s4 + $0x11c] sm:$0xf]
  %v600 = vld [vmem:[%s4 + $0x120] sm:$0xf]
  %v601 = vld [vmem:[%s4 + $0x124] sm:$0xf]
  %v602 = vld [vmem:[%s4 + $0x128] sm:$0xf]
  %v603 = vld [vmem:[%s4 + $0x12c] sm:$0xf]
  %v604 = vld [vmem:[%s4 + $0x130] sm:$0xf]
  %v605 = vld [vmem:[%s4 + $0x134] sm:$0xf]
  %v606 = vld [vmem:[%s4 + $0x138] sm:$0xf]
  %v607 = vld [vmem:[%s4 + $0x13c] sm:$0xf]
  %v608 = vld [vmem:[%s4 + $0x140] sm:$0xf]
  %v609 = vld [vmem:[%s4 + $0x144] sm:$0xf]
  %v610 = vld [vmem:[%s4 + $0x148] sm:$0xf]
  %v611 = vld [vmem:[%s4 + $0x14c] sm:$0xf]
  %v612 = vld [vmem:[%s4 + $0x150] sm:$0xf]
  %v613 = vld [vmem:[%s4 + $0x154] sm:$0xf]
  %v614 = vld [vmem:[%s4 + $0x158] sm:$0xf]
  %v615 = vld [vmem:[%s4 + $0x15c] sm:$0xf]
  %v616 = vld [vmem:[%s4 + $0x160] sm:$0xf]
  %v617 = vld [vmem:[%s4 + $0x164] sm:$0xf]
  %v618 = vld [vmem:[%s4 + $0x168] sm:$0xf]
  %v619 = vld [vmem:[%s4 + $0x16c] sm:$0xf]
  %v620 = vld [vmem:[%s4 + $0x170] sm:$0xf]
  %v621 = vld [vmem:[%s4 + $0x174] sm:$0xf]
  %v622 = vld [vmem:[%s4 + $0x178] sm:$0xf]
  %v623 = vld [vmem:[%s4 + $0x17c] sm:$0xf]
  %v627 = vunpack.c.l.b16 %v525
  %v628 = vunpack.c.h.b16 %v525
  %v629 = vunpack.c.l.b16 %v526
  %v630 = vunpack.c.h.b16 %v526
  %v631 = vunpack.c.l.b16 %v527
  %v632 = vunpack.c.h.b16 %v527
  %v633 = vpack.c.b16 %v627, %v627
  %v634 = vpack.c.b16 %v628, %v628
  %v635 = vpack.c.b16 %v629, %v629
  %v636 = vpack.c.b16 %v630, %v630
  %v637 = vpack.c.b16 %v631, %v631
  %v638 = vpack.c.b16 %v632, %v632
  %v741 = vunpack.c.l.b16 %v528
  %v742 = vunpack.c.l.b16 %v529
  %v743 = vunpack.c.l.b16 %v530
  %v744 = vunpack.c.l.b16 %v531
  %v745 = vunpack.c.l.b16 %v532
  %v746 = vunpack.c.l.b16 %v533
  %v747 = vunpack.c.l.b16 %v534
  %v748 = vunpack.c.l.b16 %v535
  %v749 = vunpack.c.l.b16 %v536
  %v750 = vunpack.c.l.b16 %v537
  %v751 = vunpack.c.l.b16 %v538
  %v752 = vunpack.c.l.b16 %v539
  %v753 = vunpack.c.l.b16 %v540
  %v754 = vunpack.c.l.b16 %v541
  %v755 = vunpack.c.l.b16 %v542
  %v756 = vunpack.c.l.b16 %v543
  %v757 = vunpack.c.l.b16 %v544
  %v758 = vunpack.c.l.b16 %v545
  %v759 = vunpack.c.l.b16 %v546
  %v760 = vunpack.c.l.b16 %v547
  %v761 = vunpack.c.l.b16 %v548
  %v762 = vunpack.c.l.b16 %v549
  %v763 = vunpack.c.l.b16 %v550
  %v764 = vunpack.c.l.b16 %v551
  %v765 = vunpack.c.l.b16 %v552
  %v766 = vunpack.c.l.b16 %v553
  %v767 = vunpack.c.l.b16 %v554
  %v768 = vunpack.c.l.b16 %v555
  %v769 = vunpack.c.l.b16 %v556
  %v770 = vunpack.c.l.b16 %v557
  %v771 = vunpack.c.l.b16 %v558
  %v772 = vunpack.c.l.b16 %v559
  %v773 = vunpack.c.l.b16 %v560
  %v774 = vunpack.c.l.b16 %v561
  %v775 = vunpack.c.l.b16 %v562
  %v776 = vunpack.c.l.b16 %v563
  %v777 = vunpack.c.l.b16 %v564
  %v778 = vunpack.c.l.b16 %v565
  %v779 = vunpack.c.l.b16 %v566
  %v780 = vunpack.c.l.b16 %v567
  %v781 = vunpack.c.l.b16 %v568
  %v782 = vunpack.c.l.b16 %v569
  %v783 = vunpack.c.l.b16 %v570
  %v784 = vunpack.c.l.b16 %v571
  %v785 = vunpack.c.l.b16 %v572
  %v786 = vunpack.c.l.b16 %v573
  %v787 = vunpack.c.l.b16 %v574
  %v788 = vunpack.c.l.b16 %v575
  %v789 = vunpack.c.l.b16 %v576
  %v790 = vunpack.c.l.b16 %v577
  %v791 = vunpack.c.l.b16 %v578
  %v792 = vunpack.c.l.b16 %v579
  %v793 = vunpack.c.l.b16 %v580
  %v794 = vunpack.c.l.b16 %v581
  %v795 = vunpack.c.l.b16 %v582
  %v796 = vunpack.c.l.b16 %v583
  %v797 = vunpack.c.l.b16 %v584
  %v798 = vunpack.c.l.b16 %v585
  %v799 = vunpack.c.l.b16 %v586
  %v800 = vunpack.c.l.b16 %v587
  %v801 = vunpack.c.l.b16 %v588
  %v802 = vunpack.c.l.b16 %v589
  %v803 = vunpack.c.l.b16 %v590
  %v804 = vunpack.c.l.b16 %v591
  %v805 = vunpack.c.l.b16 %v592
  %v806 = vunpack.c.l.b16 %v593
  %v807 = vunpack.c.l.b16 %v594
  %v808 = vunpack.c.l.b16 %v595
  %v809 = vunpack.c.l.b16 %v596
  %v810 = vunpack.c.l.b16 %v597
  %v811 = vunpack.c.l.b16 %v598
  %v812 = vunpack.c.l.b16 %v599
  %v813 = vunpack.c.l.b16 %v600
  %v814 = vunpack.c.l.b16 %v601
  %v815 = vunpack.c.l.b16 %v602
  %v816 = vunpack.c.l.b16 %v603
  %v817 = vunpack.c.l.b16 %v604
  %v818 = vunpack.c.l.b16 %v605
  %v819 = vunpack.c.l.b16 %v606
  %v820 = vunpack.c.l.b16 %v607
  %v821 = vunpack.c.l.b16 %v608
  %v822 = vunpack.c.l.b16 %v609
  %v823 = vunpack.c.l.b16 %v610
  %v824 = vunpack.c.l.b16 %v611
  %v825 = vunpack.c.l.b16 %v612
  %v826 = vunpack.c.l.b16 %v613
  %v827 = vunpack.c.l.b16 %v614
  %v828 = vunpack.c.l.b16 %v615
  %v829 = vunpack.c.l.b16 %v616
  %v830 = vunpack.c.l.b16 %v617
  %v831 = vunpack.c.l.b16 %v618
  %v832 = vunpack.c.l.b16 %v619
  %v833 = vunpack.c.l.b16 %v620
  %v834 = vunpack.c.l.b16 %v621
  %v835 = vunpack.c.l.b16 %v622
  %v836 = vunpack.c.l.b16 %v623
  %v837 = vpack.c.b16 %v742, %v741
  %v838 = vpack.c.b16 %v744, %v743
  %v839 = vpack.c.b16 %v746, %v745
  %v840 = vpack.c.b16 %v748, %v747
  %v841 = vpack.c.b16 %v750, %v749
  %v842 = vpack.c.b16 %v752, %v751
  %v843 = vpack.c.b16 %v754, %v753
  %v844 = vpack.c.b16 %v756, %v755
  %v845 = vpack.c.b16 %v758, %v757
  %v846 = vpack.c.b16 %v760, %v759
  %v847 = vpack.c.b16 %v762, %v761
  %v848 = vpack.c.b16 %v764, %v763
  %v849 = vpack.c.b16 %v766, %v765
  %v850 = vpack.c.b16 %v768, %v767
  %v851 = vpack.c.b16 %v770, %v769
  %v852 = vpack.c.b16 %v772, %v771
  %v853 = vpack.c.b16 %v774, %v773
  %v854 = vpack.c.b16 %v776, %v775
  %v855 = vpack.c.b16 %v778, %v777
  %v856 = vpack.c.b16 %v780, %v779
  %v857 = vpack.c.b16 %v782, %v781
  %v858 = vpack.c.b16 %v784, %v783
  %v859 = vpack.c.b16 %v786, %v785
  %v860 = vpack.c.b16 %v788, %v787
  %v861 = vpack.c.b16 %v790, %v789
  %v862 = vpack.c.b16 %v792, %v791
  %v863 = vpack.c.b16 %v794, %v793
  %v864 = vpack.c.b16 %v796, %v795
  %v865 = vpack.c.b16 %v798, %v797
  %v866 = vpack.c.b16 %v800, %v799
  %v867 = vpack.c.b16 %v802, %v801
  %v868 = vpack.c.b16 %v804, %v803
  %v869 = vpack.c.b16 %v806, %v805
  %v870 = vpack.c.b16 %v808, %v807
  %v871 = vpack.c.b16 %v810, %v809
  %v872 = vpack.c.b16 %v812, %v811
  %v873 = vpack.c.b16 %v814, %v813
  %v874 = vpack.c.b16 %v816, %v815
  %v875 = vpack.c.b16 %v818, %v817
  %v876 = vpack.c.b16 %v820, %v819
  %v877 = vpack.c.b16 %v822, %v821
  %v878 = vpack.c.b16 %v824, %v823
  %v879 = vpack.c.b16 %v826, %v825
  %v880 = vpack.c.b16 %v828, %v827
  %v881 = vpack.c.b16 %v830, %v829
  %v882 = vpack.c.b16 %v832, %v831
  %v883 = vpack.c.b16 %v834, %v833
  %v884 = vpack.c.b16 %v836, %v835
  %933 = vrot.lane.b32.xlu0 %v133, 96
  %v934 = vpop.permute.xlu0 %933
  %936 = vmatpush.bf16.msra.mxu0 %v844
  %937 = vmatpush.bf16.msra.mxu0 %v843
  %938 = vmatpush.bf16.msra.mxu0 %v842
  %939 = vmatpush.bf16.msra.mxu0 %v841
  %940 = vmatpush.bf16.msra.mxu0 %v840
  %941 = vmatpush.bf16.msra.mxu0 %v839
  %942 = vmatpush.bf16.msra.mxu0 %v838
  %943 = vmatpush.bf16.msra.mxu0 %v837
  %944 = vmatmul.bf16.gmra.mxu0 %v633
  %v945 = vpop.f32.mrf.mxu0
  %v946 = vadd.f32 %v934, %v945
  %v947 = vpop.f32.mrf.mxu0
  %948 = vdwg.mxu0
  %949 = vmatpush.bf16.msra.mxu0 %v852
  %950 = vmatpush.bf16.msra.mxu0 %v851
  %951 = vmatpush.bf16.msra.mxu0 %v850
  %952 = vmatpush.bf16.msra.mxu0 %v849
  %953 = vmatpush.bf16.msra.mxu0 %v848
  %954 = vmatpush.bf16.msra.mxu0 %v847
  %955 = vmatpush.bf16.msra.mxu0 %v846
  %956 = vmatpush.bf16.msra.mxu0 %v845
  %957 = vmatmul.bf16.gmra.mxu0 %v634
  %v958 = vpop.f32.mrf.mxu0
  %v959 = vadd.f32 %v946, %v958
  %v960 = vpop.f32.mrf.mxu0
  %961 = vdwg.mxu0
  %962 = vmatpush.bf16.msra.mxu0 %v860
  %963 = vmatpush.bf16.msra.mxu0 %v859
  %964 = vmatpush.bf16.msra.mxu0 %v858
  %965 = vmatpush.bf16.msra.mxu0 %v857
  %966 = vmatpush.bf16.msra.mxu0 %v856
  %967 = vmatpush.bf16.msra.mxu0 %v855
  %968 = vmatpush.bf16.msra.mxu0 %v854
  %969 = vmatpush.bf16.msra.mxu0 %v853
  %970 = vmatmul.bf16.gmra.mxu0 %v635
  %v971 = vpop.f32.mrf.mxu0
  %v972 = vadd.f32 %v959, %v971
  %v973 = vpop.f32.mrf.mxu0
  %974 = vdwg.mxu0
  %975 = vmatpush.bf16.msra.mxu0 %v868
  %976 = vmatpush.bf16.msra.mxu0 %v867
  %977 = vmatpush.bf16.msra.mxu0 %v866
  %978 = vmatpush.bf16.msra.mxu0 %v865
  %979 = vmatpush.bf16.msra.mxu0 %v864
  %980 = vmatpush.bf16.msra.mxu0 %v863
  %981 = vmatpush.bf16.msra.mxu0 %v862
  %982 = vmatpush.bf16.msra.mxu0 %v861
  %983 = vmatmul.bf16.gmra.mxu0 %v636
  %v984 = vpop.f32.mrf.mxu0
  %v985 = vadd.f32 %v972, %v984
  %v986 = vpop.f32.mrf.mxu0
  %987 = vdwg.mxu0
  %988 = vmatpush.bf16.msra.mxu0 %v876
  %989 = vmatpush.bf16.msra.mxu0 %v875
  %990 = vmatpush.bf16.msra.mxu0 %v874
  %991 = vmatpush.bf16.msra.mxu0 %v873
  %992 = vmatpush.bf16.msra.mxu0 %v872
  %993 = vmatpush.bf16.msra.mxu0 %v871
  %994 = vmatpush.bf16.msra.mxu0 %v870
  %995 = vmatpush.bf16.msra.mxu0 %v869
  %996 = vmatmul.bf16.gmra.mxu0 %v637
  %v997 = vpop.f32.mrf.mxu0
  %v998 = vadd.f32 %v985, %v997
  %v999 = vpop.f32.mrf.mxu0
  %1000 = vdwg.mxu0
  %1001 = vmatpush.bf16.msra.mxu0 %v884
  %1002 = vmatpush.bf16.msra.mxu0 %v883
  %1003 = vmatpush.bf16.msra.mxu0 %v882
  %1004 = vmatpush.bf16.msra.mxu0 %v881
  %1005 = vmatpush.bf16.msra.mxu0 %v880
  %1006 = vmatpush.bf16.msra.mxu0 %v879
  %1007 = vmatpush.bf16.msra.mxu0 %v878
  %1008 = vmatpush.bf16.msra.mxu0 %v877
  %1009 = vmatmul.bf16.gmra.mxu0 %v638
  %v1010 = vpop.f32.mrf.mxu0
  %v1011 = vadd.f32 %v998, %v1010
  %v1012 = vpop.f32.mrf.mxu0
  %1013 = vdwg.mxu0
  %vm1014 = vcmp.ge.f32.partialorder %v1011, 0.0
  %v1015 = vmul.f32 %v1011, 0.01
  %v1016 = vsel %vm1014, %v1011, %v1015
  %v1017 = vld [vmem:[%s2] sm:$0xff]
  %v1018 = vld [vmem:[%s5] sm:$0xff]
  %v1019 = vld [vmem:[%s5 + $0x8] sm:$0xff]
  %v1020 = vld [vmem:[%s5 + $0x10] sm:$0x1]
  %v1021 = vperm.slane %v32, 1
  %1022 = vrot.lane.b32.xlu0 %v133, 64
  %v1023 = vpop.permute.xlu0 %1022
  %1024 = vrot.lane.b32.xlu0 %v1021, 64
  %v1025 = vpop.permute.xlu0 %1024
  %vm1026 = vcmask 523264
  %v1027 = vsel %vm1026, %v1023, %v1025
  %vm1029 = vcmask 138240
  %v1031 = vsel %vm1029, %v1017, 0
  %vm1033 = vcmask 1040384
  %v1035 = vsel %vm1033, %v1020, 0
  %1037 = vmatpush.msra.mxu0 0.0
  %1038 = vmatpush.msra.mxu0 0.0
  %1039 = vmatpush.msra.mxu0 0.0
  %1040 = vmatpush.msra.mxu0 0.0
  %1041 = vmatpush.msra.mxu0 0.0
  %1042 = vmatpush.msra.mxu0 0.0
  %1043 = vmatpush.msra.mxu0 0.0
  %1044 = vmatpush.msra.mxu0 0.0
  %1045 = vmatpush.msra.mxu0 0.0
  %1046 = vmatpush.msra.mxu0 0.0
  %1047 = vmatpush.msra.mxu0 0.0
  %1048 = vmatpush.msra.mxu0 0.0
  %1049 = vmatpush.msra.mxu0 0.0
  %1050 = vmatpush.msra.mxu0 %v1035
  %1051 = vmatpush.msra.mxu0 %v1019
  %1052 = vmatpush.msra.mxu0 %v1018
  %1053 = vmatmul.f32.gmra.mxu0 %v1031
  %v1054 = vpop.f32.mrf.mxu0
  %v1055 = vadd.f32 %v1027, %v1054
  %1056 = vdwg.mxu0
  %vm1057 = vcmp.ge.f32.partialorder %v1055, 0.0
  %v1058 = vmul.f32 %v1055, 0.01
  %v1059 = vsel %vm1057, %v1055, %v1058
  %1061 = vrot.lane.b32.xlu0 %v1016, 32
  %v1062 = vpop.permute.xlu0 %1061
  %1065 = vrot.lane.b32.xlu0 %v1059, 64
  %v1066 = vpop.permute.xlu0 %1065
  %vm1068 = vcmask 261120
  %v1069 = vsel %vm1068, %v524, %v1062
  %v1070 = vsel %vm1026, %v1069, %v1066
  %v1071 = vld [vmem:[%s7] sm:$0xff]
  %v1072 = vld [vmem:[%s7 + $0x8] sm:$0xff]
  %v1073 = vld [vmem:[%s7 + $0x10] sm:$0xff]
  %v1074 = vld [vmem:[%s7 + $0x18] sm:$0xff]
  %v1075 = vld [vmem:[%s7 + $0x20] sm:$0xff]
  %v1076 = vld [vmem:[%s7 + $0x28] sm:$0xff]
  %v1077 = vld [vmem:[%s7 + $0x30] sm:$0xff]
  %v1078 = vld [vmem:[%s7 + $0x38] sm:$0xff]
  %v1079 = vld [vmem:[%s7 + $0x40] sm:$0xff]
  %v1080 = vld [vmem:[%s7 + $0x48] sm:$0xff]
  %v1081 = vld [vmem:[%s7 + $0x50] sm:$0xff]
  %v1082 = vld [vmem:[%s7 + $0x58] sm:$0xff]
  %v1083 = vld [vmem:[%s7 + $0x60] sm:$0xff]
  %v1084 = vld [vmem:[%s7 + $0x68] sm:$0xff]
  %v1085 = vld [vmem:[%s7 + $0x70] sm:$0xff]
  %v1086 = vld [vmem:[%s7 + $0x78] sm:$0xff]
  %v1087 = vld [vmem:[%s7 + $0x80] sm:$0xff]
  %v1088 = vld [vmem:[%s7 + $0x88] sm:$0xff]
  %v1089 = vld [vmem:[%s7 + $0x90] sm:$0xff]
  %v1090 = vld [vmem:[%s7 + $0x98] sm:$0xff]
  %v1091 = vld [vmem:[%s8] sm:$0x1]
  %v1093 = vperm.slane %v1091, 0
  %v1095 = vsel %vm1068, %v1066, 0
  %1097 = vmatpush.msra.mxu0 %v1086
  %1098 = vmatpush.msra.mxu0 %v1085
  %1099 = vmatpush.msra.mxu0 %v1084
  %1100 = vmatpush.msra.mxu0 %v1083
  %1101 = vmatpush.msra.mxu0 %v1082
  %1102 = vmatpush.msra.mxu0 %v1081
  %1103 = vmatpush.msra.mxu0 %v1080
  %1104 = vmatpush.msra.mxu0 %v1079
  %1105 = vmatpush.msra.mxu0 %v1078
  %1106 = vmatpush.msra.mxu0 %v1077
  %1107 = vmatpush.msra.mxu0 %v1076
  %1108 = vmatpush.msra.mxu0 %v1075
  %1109 = vmatpush.msra.mxu0 %v1074
  %1110 = vmatpush.msra.mxu0 %v1073
  %1111 = vmatpush.msra.mxu0 %v1072
  %1112 = vmatpush.msra.mxu0 %v1071
  %1113 = vmatmul.f32.gmra.mxu0 %v1070
  %v1114 = vpop.f32.mrf.mxu0
  %v1115 = vadd.f32 %v1093, %v1114
  %1116 = vdwg.mxu0
  %1117 = vmatpush.msra.mxu0 0.0
  %1118 = vmatpush.msra.mxu0 0.0
  %1119 = vmatpush.msra.mxu0 0.0
  %1120 = vmatpush.msra.mxu0 0.0
  %1121 = vmatpush.msra.mxu0 0.0
  %1122 = vmatpush.msra.mxu0 0.0
  %1123 = vmatpush.msra.mxu0 0.0
  %1124 = vmatpush.msra.mxu0 0.0
  %1125 = vmatpush.msra.mxu0 0.0
  %1126 = vmatpush.msra.mxu0 0.0
  %1127 = vmatpush.msra.mxu0 0.0
  %1128 = vmatpush.msra.mxu0 0.0
  %1129 = vmatpush.msra.mxu0 %v1090
  %1130 = vmatpush.msra.mxu0 %v1089
  %1131 = vmatpush.msra.mxu0 %v1088
  %1132 = vmatpush.msra.mxu0 %v1087
  %1133 = vmatmul.f32.gmra.mxu0 %v1095
  %v1134 = vpop.f32.mrf.mxu0
  %v1135 = vadd.f32 %v1115, %v1134
  %1136 = vdwg.mxu0
  %vm1137 = vcmp.ge.f32.partialorder %v1135, 0.0
  %v1138 = vmul.f32 %v1135, 0.01
  %v1139 = vsel %vm1137, %v1135, %v1138
  %vm1140 = vcmask 392192
  %1141 = vst.msk [vmem:[%s9] sm:$0xff] %vm1140, %v1139
  // Predicated region
  $region38: #{all_in_one_forward.2} parent=0 // pred_check
    _
  $region39: #{all_in_one_forward.2} parent=0 // pred_check_branch
    %1143 = sbr.rel (0) target = $region41
  $region40: #{all_in_one_forward.2} parent=0 // pred_region
    _
  $region41: #{all_in_one_forward.2} parent=0 // pred_fallthru
    _
  // Predicated region
  $region42: #{all_in_one_forward.2} parent=0 // pred_check
    _
  $region43: #{all_in_one_forward.2} parent=0 // pred_check_branch
    %1145 = sbr.rel (0) target = $region45
  $region44: #{all_in_one_forward.2} parent=0 // pred_region
    _
  $region45: #{all_in_one_forward.2} parent=0 // pred_fallthru
    _

</llo_original>
